<compile_context>
chip_gen: v6e
topology: v6e:2x2x1
jax: 0.10.0
libtpu: 0.0.40
codegen_flags: <defaults>
</compile_context>

<pallas_src>
import functools

import jax
import jax.numpy as jnp
from jax.experimental import pallas as pl
from jax.experimental.pallas import tpu as pltpu


def _attention_pool_kernel(x_ref, w1_ref, b1_ref, w2_ref, o_ref, m_sc, l_sc,
                           *, seq_len, seq_tile, mask_seq, tanh_bf16):
    """Online-softmax attention pooling over one (batch-tile, seq-tile) block.

    x_ref : (TB, tS, H) bf16   hidden-state tile
    w1_ref: (H, H)      bf16   first Linear weight, (in, out) layout
    b1_ref: (1, H)      f32
    w2_ref: (1, H)      f32    second Linear weight as a row (VPU/XLU path)
    o_ref : (TB, H)     f32    resident output block == softmax numerator
    m_sc  : (TB, 1)     f32    running max
    l_sc  : (TB, 1)     f32    running denominator
    """
    s_idx = pl.program_id(1)

    @pl.when(s_idx == 0)
    def _():
        m_sc[...] = jnp.full(m_sc.shape, -jnp.inf, m_sc.dtype)
        l_sc[...] = jnp.zeros(l_sc.shape, l_sc.dtype)
        o_ref[...] = jnp.zeros(o_ref.shape, o_ref.dtype)

    x = x_ref[...]                                   # (TB, tS, H) bf16
    tb, ts, hdim = x.shape

    # ---- scores = Linear(H,1)(tanh(Linear(H,H)(x))) ----
    # MXU matmul with tall M = TB*tS; bf16 inputs, f32 accumulation.
    x2d = x.reshape(tb * ts, hdim)
    z = jnp.dot(x2d, w1_ref[...], preferred_element_type=jnp.float32) + b1_ref[...]
    h = jnp.tanh(z.astype(jnp.bfloat16)) if tanh_bf16 else jnp.tanh(z)
    # N=1 projection on the VPU (mul) + XLU (lane reduce) instead of the MXU.
    scores = jnp.sum(h.reshape(tb, ts, hdim) * w2_ref[...], axis=-1)  # (TB,tS) f32
    # (b2 omitted: adding a constant to every score is a softmax no-op)

    if mask_seq:  # static flag: only present when the sequence was padded
        pos = s_idx * seq_tile + jax.lax.broadcasted_iota(jnp.int32, (tb, ts), 1)
        scores = jnp.where(pos < seq_len, scores, -jnp.inf)

    # ---- online softmax over the sequence axis; numerator lives in o_ref ----
    m_prev = m_sc[...]
    m_new = jnp.maximum(m_prev, jnp.max(scores, axis=-1, keepdims=True))
    alpha = jnp.exp(m_prev - m_new)                  # (TB, 1)
    p = jnp.exp(scores - m_new)                      # (TB, tS)
    l_sc[...] = alpha * l_sc[...] + jnp.sum(p, axis=-1, keepdims=True)
    o_ref[...] = alpha * o_ref[...] + jnp.sum(
        x.astype(jnp.float32) * p[:, :, None], axis=1)
    m_sc[...] = m_new

    @pl.when(s_idx == pl.num_programs(1) - 1)
    def _():
        o_ref[...] = o_ref[...] * pl.reciprocal(l_sc[...], approx=True)


def prepare_params(w1, b1, w2, b2=None):
    """One-time parameter prep (hoisted out of the per-call path).

    w1: (H, H) torch layout (out, in); b1: (H,); w2: (1, H); b2: dropped
    (a constant shift of all scores is a softmax no-op)."""
    del b2
    w1_t = jnp.asarray(w1, jnp.float32).T.astype(jnp.bfloat16)   # (H_in, H_out)
    b1_r = jnp.asarray(b1, jnp.float32).reshape(1, -1)           # (1, H)
    w2_r = jnp.asarray(w2, jnp.float32).reshape(1, -1)           # (1, H) row
    return w1_t, b1_r, w2_r


def _vmem_capacity_bytes():
    try:
        return int(pltpu.get_tpu_info().vmem_capacity_bytes)
    except Exception:
        return 64 * 2**20      # conservative default (v7x per-core size)


def _tanh_in_bf16():
    # bf16 EUP exists on v6e/v7x; v5x has no bf16 VPU/EUP -> keep f32 tanh.
    try:
        return "v5" not in jax.devices()[0].device_kind.lower()
    except Exception:
        return False


def _pick_seq_tile(S, tb, H, budget_bytes):
    """Largest power-of-two seq tile (>=8) whose bf16 x tile fits the budget."""
    max_ts = max(8, int(pl.next_power_of_2(S)))
    ts = 8
    while ts < max_ts and tb * (2 * ts) * H * 2 <= budget_bytes:
        ts *= 2
    return ts


def _const_spec(shape, single_buffer):
    ndim = len(shape)
    index_map = lambda b, s: (0,) * ndim
    if single_buffer:
        # Constant across the grid -> one VMEM copy is enough.
        return pl.BlockSpec(shape, index_map, pipeline_mode=pl.Buffered(1))
    return pl.BlockSpec(shape, index_map)


def _pallas_attention(x, w1_t, b1_r, w2_r, *, tb, ts, seq_len, mask_seq,
                      tanh_bf16, vmem_limit, single_buffer_weights):
    b_pad, s_pad, H = x.shape
    kernel = functools.partial(_attention_pool_kernel, seq_len=seq_len,
                               seq_tile=ts, mask_seq=mask_seq,
                               tanh_bf16=tanh_bf16)
    grid_spec = pltpu.PrefetchScalarGridSpec(
        num_scalar_prefetch=0,
        grid=(b_pad // tb, s_pad // ts),        # reduction (sequence) axis last
        in_specs=[
            pl.BlockSpec((tb, ts, H), lambda b, s: (b, s, 0)),
            _const_spec((H, H), single_buffer_weights),
            _const_spec((1, H), single_buffer_weights),
            _const_spec((1, H), single_buffer_weights),
        ],
        out_specs=pl.BlockSpec((tb, H), lambda b, s: (b, 0)),
        scratch_shapes=[
            pltpu.VMEM((tb, 1), jnp.float32),   # running max  m
            pltpu.VMEM((tb, 1), jnp.float32),   # running sum  l
        ],
    )
    return pl.pallas_call(
        kernel,
        out_shape=jax.ShapeDtypeStruct((b_pad, H), jnp.float32),
        grid_spec=grid_spec,
        compiler_params=pltpu.CompilerParams(
            dimension_semantics=("parallel", "arbitrary"),
            vmem_limit_bytes=vmem_limit,
        ),
    )(x, w1_t, b1_r, w2_r)


def attention_layer_pallas(hidden_states, prepared_params, *, tb=8):
    """hidden_states: (B, S, H) float32 or bfloat16; params from prepare_params."""
    w1_t, b1_r, w2_r = prepared_params
    B, S, H = hidden_states.shape
    out_dtype = hidden_states.dtype

    # Stream x from HBM in bf16 (cast once here if the caller passed f32);
    # f32 upcast only happens inside the weighted-sum accumulation.
    x = hidden_states if hidden_states.dtype == jnp.bfloat16 \
        else hidden_states.astype(jnp.bfloat16)

    # ---- generation-aware VMEM budgeting -------------------------------
    cap = _vmem_capacity_bytes()                 # 64 MiB (v7x) / 128 MiB (v5e,v6e)
    usable = (3 * cap) // 4                      # never request the full capacity
    w1_bytes = 2 * (H * H * 2)                   # assume double-buffered (worst case)
    fixed = (w1_bytes + 8 * H * 4 + 4 * tb * H * 4
             + 2 * 8 * 128 * 4 + (4 << 20))      # b1/w2, out slab, m/l, headroom
    # per-step footprint ~= 2x bf16 x tile (double buffered)
    #                       + ~2 f32 intermediates (tanh h, weighted sum) = 4x
    tile_budget = max((usable - fixed) // 6, tb * 8 * H * 2)
    ts = _pick_seq_tile(S, tb, H, tile_budget)

    # Pad batch to a multiple of tb (dense (TB,H) output slabs) and the
    # sequence to a multiple of ts; padded seq positions are masked to -inf
    # in the kernel, padded batch rows are sliced away below.
    b_pad = ((B + tb - 1) // tb) * tb
    s_pad = ((S + ts - 1) // ts) * ts
    mask_seq = s_pad != S
    if b_pad != B or s_pad != S:
        x = jnp.pad(x, ((0, b_pad - B), (0, s_pad - S), (0, 0)))

    est = 6 * (tb * ts * H * 2) + fixed
    vmem_limit = int(min(usable, max(est, 16 << 20)))

    common = dict(tb=tb, ts=ts, seq_len=S, mask_seq=mask_seq,
                  tanh_bf16=_tanh_in_bf16(), vmem_limit=vmem_limit)
    try:
        out = _pallas_attention(x, w1_t, b1_r, w2_r,
                                single_buffer_weights=True, **common)
    except Exception:
        # Fallback if this jax build rejects pl.Buffered(1) on pallas_call specs.
        out = _pallas_attention(x, w1_t, b1_r, w2_r,
                                single_buffer_weights=False, **common)
    return out[:B].astype(out_dtype)


def attention_layer_ref(hidden_states, w1, b1, w2, b2):
    # Pure-JAX f32 reference mirroring the PyTorch forward.
    h = jnp.tanh(jnp.einsum("bsh,oh->bso", hidden_states, w1) + b1)     # (B,S,H)
    scores = jnp.einsum("bsh,oh->bso", h, w2)[..., 0] + b2[0]           # (B,S)
    attn = jax.nn.softmax(scores, axis=-1)                              # (B,S)
    return jnp.sum(hidden_states * attn[..., None], axis=1)             # (B,H)


if __name__ == "__main__":
    key = jax.random.PRNGKey(0)
    k_x, k_w1, k_b1, k_w2, k_b2, k_x2 = jax.random.split(key, 6)

    B, S, H = 2, 8, 32
    hidden_states = jax.random.normal(k_x, (B, S, H), dtype=jnp.float32)
    # deterministic "nn.Linear"-style parameters (torch layout: (out, in))
    w1 = jax.random.normal(k_w1, (H, H), dtype=jnp.float32) * (1.0 / jnp.sqrt(H))
    b1 = jax.random.normal(k_b1, (H,), dtype=jnp.float32) * 0.1
    w2 = jax.random.normal(k_w2, (1, H), dtype=jnp.float32) * (1.0 / jnp.sqrt(H))
    b2 = jax.random.normal(k_b2, (1,), dtype=jnp.float32) * 0.1

    params = prepare_params(w1, b1, w2, b2)   # hoisted one-time prep

    out = jax.block_until_ready(attention_layer_pallas(hidden_states, params))
    ref = attention_layer_ref(hidden_states, w1, b1, w2, b2)
    assert out.shape == (B, H)
    # bf16 x / W1 (and bf16 tanh on v6e/v7x) vs f32 reference -> loose tolerance
    assert jnp.allclose(out, ref, atol=4e-2, rtol=4e-2), "mismatch vs reference"

    # Awkward (non-power-of-two) batch & sequence: exercises pad + -inf mask path.
    B2, S2 = 3, 13
    hs2 = jax.random.normal(k_x2, (B2, S2, H), dtype=jnp.float32)
    out2 = jax.block_until_ready(attention_layer_pallas(hs2, params))
    ref2 = attention_layer_ref(hs2, w1, b1, w2, b2)
    assert out2.shape == (B2, H)
    assert jnp.allclose(out2, ref2, atol=4e-2, rtol=4e-2), "mismatch (masked path)"

    print("KERNEL_OK")
</pallas_src>

<mosaic_0001>
module attributes {stable_mosaic.version = 11 : i64} {
  func.func @_attention_pool_kernel(%arg0: i32, %arg1: i32, %arg2: memref<8x8x32xbf16, #tpu.memory_space<vmem>>, %arg3: memref<32x32xbf16, #tpu.memory_space<vmem>>, %arg4: memref<1x32xf32, #tpu.memory_space<vmem>>, %arg5: memref<1x32xf32, #tpu.memory_space<vmem>>, %arg6: memref<8x32xf32, #tpu.memory_space<vmem>>, %arg7: memref<8x1xf32, #tpu.memory_space<vmem>>, %arg8: memref<8x1xf32, #tpu.memory_space<vmem>>) attributes {dimension_semantics = [#tpu.dimension_semantics<parallel>, #tpu.dimension_semantics<arbitrary>], iteration_bounds = array<i64: 1, 1>, scalar_prefetch = 0 : i64, scratch_operands = 2 : i64, tpu.core_type = #tpu.core_type<tc>, window_params = [{transform_indices = @transform_0, window_bounds = array<i64: 8, 8, 32>}, {pipeline_mode = #tpu.pipeline_mode<synchronous>, transform_indices = @transform_1, window_bounds = array<i64: 32, 32>}, {pipeline_mode = #tpu.pipeline_mode<synchronous>, transform_indices = @transform_2, window_bounds = array<i64: 1, 32>}, {pipeline_mode = #tpu.pipeline_mode<synchronous>, transform_indices = @transform_3, window_bounds = array<i64: 1, 32>}, {transform_indices = @transform_4, window_bounds = array<i64: 8, 32>}]} {
    %c0_i32 = arith.constant 0 : i32
    %0 = arith.cmpi eq, %arg1, %c0_i32 : i32
    %1 = arith.extui %0 : i1 to i32
    %c0_i32_0 = arith.constant 0 : i32
    %2 = arith.cmpi ne, %1, %c0_i32_0 : i32
    scf.if %2 {
      %cst_27 = arith.constant 0xFF800000 : f32
      %48 = vector.broadcast %cst_27 : f32 to vector<8x1xf32>
      %c0_28 = arith.constant 0 : index
      %c0_29 = arith.constant 0 : index
      %49 = vector.load %arg7[%c0_28, %c0_29] : memref<8x1xf32, #tpu.memory_space<vmem>>, vector<8x1xf32>
      tpu.vector_store %arg7[%c0_28, %c0_29], %48 {strides = array<i32>} : memref<8x1xf32, #tpu.memory_space<vmem>>, vector<8x1xf32>,
      %cst_30 = arith.constant 0.000000e+00 : f32
      %50 = vector.broadcast %cst_30 : f32 to vector<8x1xf32>
      %c0_31 = arith.constant 0 : index
      %c0_32 = arith.constant 0 : index
      %51 = vector.load %arg8[%c0_31, %c0_32] : memref<8x1xf32, #tpu.memory_space<vmem>>, vector<8x1xf32>
      tpu.vector_store %arg8[%c0_31, %c0_32], %50 {strides = array<i32>} : memref<8x1xf32, #tpu.memory_space<vmem>>, vector<8x1xf32>,
      %cst_33 = arith.constant 0.000000e+00 : f32
      %52 = vector.broadcast %cst_33 : f32 to vector<8x32xf32>
      %c0_34 = arith.constant 0 : index
      %c0_35 = arith.constant 0 : index
      %53 = vector.load %arg6[%c0_34, %c0_35] : memref<8x32xf32, #tpu.memory_space<vmem>>, vector<8x32xf32>
      tpu.vector_store %arg6[%c0_34, %c0_35], %52 {strides = array<i32>} : memref<8x32xf32, #tpu.memory_space<vmem>>, vector<8x32xf32>,
    } else {
    }
    %c0 = arith.constant 0 : index
    %c0_1 = arith.constant 0 : index
    %c0_2 = arith.constant 0 : index
    %3 = vector.load %arg2[%c0, %c0_1, %c0_2] : memref<8x8x32xbf16, #tpu.memory_space<vmem>>, vector<8x8x32xbf16>
    %4 = vector.shape_cast %3 : vector<8x8x32xbf16> to vector<64x32xbf16>
    %c0_3 = arith.constant 0 : index
    %c0_4 = arith.constant 0 : index
    %5 = vector.load %arg3[%c0_3, %c0_4] : memref<32x32xbf16, #tpu.memory_space<vmem>>, vector<32x32xbf16>
    %cst = arith.constant dense<0.000000e+00> : vector<64x32xf32>
    %6 = tpu.matmul %4, %5, %cst {dimension_numbers = #tpu.dot_dimension_numbers<[1], [0], [0], [1], [0, 0, 1, 1], [], []>} : vector<64x32xbf16>, vector<32x32xbf16>, vector<64x32xf32> -> vector<64x32xf32>
    %c0_5 = arith.constant 0 : index
    %c0_6 = arith.constant 0 : index
    %7 = vector.load %arg4[%c0_5, %c0_6] : memref<1x32xf32, #tpu.memory_space<vmem>>, vector<1x32xf32>
    %8 = vector.broadcast %7 : vector<1x32xf32> to vector<64x32xf32>
    %9 = arith.addf %6, %8 : vector<64x32xf32>
    %10 = arith.truncf %9 : vector<64x32xf32> to vector<64x32xbf16>
    %11 = math.tanh %10 : vector<64x32xbf16>
    %12 = vector.shape_cast %11 : vector<64x32xbf16> to vector<8x8x32xbf16>
    %c0_7 = arith.constant 0 : index
    %c0_8 = arith.constant 0 : index
    %13 = vector.load %arg5[%c0_7, %c0_8] : memref<1x32xf32, #tpu.memory_space<vmem>>, vector<1x32xf32>
    %14 = arith.extf %12 : vector<8x8x32xbf16> to vector<8x8x32xf32>
    %15 = vector.shape_cast %13 : vector<1x32xf32> to vector<1x1x32xf32>
    %16 = vector.broadcast %15 : vector<1x1x32xf32> to vector<8x8x32xf32>
    %17 = arith.mulf %14, %16 : vector<8x8x32xf32>
    %cst_9 = arith.constant dense<0.000000e+00> : vector<8x8xf32>
    %18 = vector.multi_reduction <add>, %17, %cst_9 [2] : vector<8x8x32xf32> to vector<8x8xf32>
    %c0_10 = arith.constant 0 : index
    %c0_11 = arith.constant 0 : index
    %19 = vector.load %arg7[%c0_10, %c0_11] : memref<8x1xf32, #tpu.memory_space<vmem>>, vector<8x1xf32>
    %cst_12 = arith.constant dense<0xFF800000> : vector<8xf32>
    %20 = vector.multi_reduction <maximumf>, %18, %cst_12 [1] : vector<8x8xf32> to vector<8xf32>
    %21 = vector.shape_cast %20 : vector<8xf32> to vector<8x1xf32>
    %22 = arith.maximumf %19, %21 : vector<8x1xf32>
    %23 = arith.subf %19, %22 : vector<8x1xf32>
    %24 = math.exp %23 : vector<8x1xf32>
    %25 = vector.broadcast %22 : vector<8x1xf32> to vector<8x8xf32>
    %26 = arith.subf %18, %25 : vector<8x8xf32>
    %27 = math.exp %26 : vector<8x8xf32>
    %c0_13 = arith.constant 0 : index
    %c0_14 = arith.constant 0 : index
    %28 = vector.load %arg8[%c0_13, %c0_14] : memref<8x1xf32, #tpu.memory_space<vmem>>, vector<8x1xf32>
    %29 = arith.mulf %24, %28 : vector<8x1xf32>
    %cst_15 = arith.constant dense<0.000000e+00> : vector<8xf32>
    %30 = vector.multi_reduction <add>, %27, %cst_15 [1] : vector<8x8xf32> to vector<8xf32>
    %31 = vector.shape_cast %30 : vector<8xf32> to vector<8x1xf32>
    %32 = arith.addf %29, %31 : vector<8x1xf32>
    %c0_16 = arith.constant 0 : index
    %c0_17 = arith.constant 0 : index
    %33 = vector.load %arg8[%c0_16, %c0_17] : memref<8x1xf32, #tpu.memory_space<vmem>>, vector<8x1xf32>
    tpu.vector_store %arg8[%c0_16, %c0_17], %32 {strides = array<i32>} : memref<8x1xf32, #tpu.memory_space<vmem>>, vector<8x1xf32>,
    %c0_18 = arith.constant 0 : index
    %c0_19 = arith.constant 0 : index
    %34 = vector.load %arg6[%c0_18, %c0_19] : memref<8x32xf32, #tpu.memory_space<vmem>>, vector<8x32xf32>
    %35 = vector.broadcast %24 : vector<8x1xf32> to vector<8x32xf32>
    %36 = arith.mulf %35, %34 : vector<8x32xf32>
    %37 = arith.extf %3 : vector<8x8x32xbf16> to vector<8x8x32xf32>
    %38 = vector.shape_cast %27 : vector<8x8xf32> to vector<8x8x1xf32>
    %39 = vector.broadcast %38 : vector<8x8x1xf32> to vector<8x8x32xf32>
    %40 = arith.mulf %37, %39 : vector<8x8x32xf32>
    %cst_20 = arith.constant dense<0.000000e+00> : vector<8x32xf32>
    %41 = vector.multi_reduction <add>, %40, %cst_20 [1] : vector<8x8x32xf32> to vector<8x32xf32>
    %42 = arith.addf %36, %41 : vector<8x32xf32>
    %c0_21 = arith.constant 0 : index
    %c0_22 = arith.constant 0 : index
    %43 = vector.load %arg6[%c0_21, %c0_22] : memref<8x32xf32, #tpu.memory_space<vmem>>, vector<8x32xf32>
    tpu.vector_store %arg6[%c0_21, %c0_22], %42 {strides = array<i32>} : memref<8x32xf32, #tpu.memory_space<vmem>>, vector<8x32xf32>,
    %c0_23 = arith.constant 0 : index
    %c0_24 = arith.constant 0 : index
    %44 = vector.load %arg7[%c0_23, %c0_24] : memref<8x1xf32, #tpu.memory_space<vmem>>, vector<8x1xf32>
    tpu.vector_store %arg7[%c0_23, %c0_24], %22 {strides = array<i32>} : memref<8x1xf32, #tpu.memory_space<vmem>>, vector<8x1xf32>,
    %c0_i32_25 = arith.constant 0 : i32
    %45 = arith.cmpi eq, %arg1, %c0_i32_25 : i32
    %46 = arith.extui %45 : i1 to i32
    %c0_i32_26 = arith.constant 0 : i32
    %47 = arith.cmpi ne, %46, %c0_i32_26 : i32
    scf.if %47 {
      %c0_27 = arith.constant 0 : index
      %c0_28 = arith.constant 0 : index
      %48 = vector.load %arg6[%c0_27, %c0_28] : memref<8x32xf32, #tpu.memory_space<vmem>>, vector<8x32xf32>
      %c0_29 = arith.constant 0 : index
      %c0_30 = arith.constant 0 : index
      %49 = vector.load %arg8[%c0_29, %c0_30] : memref<8x1xf32, #tpu.memory_space<vmem>>, vector<8x1xf32>
      %50 = tpu.reciprocal %49 {approx = true} : vector<8x1xf32> -> vector<8x1xf32>
      %51 = vector.broadcast %50 : vector<8x1xf32> to vector<8x32xf32>
      %52 = arith.mulf %48, %51 : vector<8x32xf32>
      %c0_31 = arith.constant 0 : index
      %c0_32 = arith.constant 0 : index
      %53 = vector.load %arg6[%c0_31, %c0_32] : memref<8x32xf32, #tpu.memory_space<vmem>>, vector<8x32xf32>
      tpu.vector_store %arg6[%c0_31, %c0_32], %52 {strides = array<i32>} : memref<8x32xf32, #tpu.memory_space<vmem>>, vector<8x32xf32>,
    } else {
    }
    return
  }
  func.func @transform_0(%arg0: i32, %arg1: i32) -> (i32, i32, i32) {
    %c0_i32 = arith.constant 0 : i32
    %c0_i32_0 = arith.constant 0 : i32
    return %arg0, %arg1, %c0_i32 : i32, i32, i32
  }
  func.func @transform_1(%arg0: i32, %arg1: i32) -> (i32, i32) {
    %c0_i32 = arith.constant 0 : i32
    %c0_i32_0 = arith.constant 0 : i32
    %c0_i32_1 = arith.constant 0 : i32
    return %c0_i32, %c0_i32_0 : i32, i32
  }
  func.func @transform_2(%arg0: i32, %arg1: i32) -> (i32, i32) {
    %c0_i32 = arith.constant 0 : i32
    %c0_i32_0 = arith.constant 0 : i32
    %c0_i32_1 = arith.constant 0 : i32
    return %c0_i32, %c0_i32_0 : i32, i32
  }
  func.func @transform_3(%arg0: i32, %arg1: i32) -> (i32, i32) {
    %c0_i32 = arith.constant 0 : i32
    %c0_i32_0 = arith.constant 0 : i32
    %c0_i32_1 = arith.constant 0 : i32
    return %c0_i32, %c0_i32_0 : i32, i32
  }
  func.func @transform_4(%arg0: i32, %arg1: i32) -> (i32, i32) {
    %c0_i32 = arith.constant 0 : i32
    %c0_i32_0 = arith.constant 0 : i32
    return %arg0, %c0_i32 : i32, i32
  }
}

module attributes {stable_mosaic.version = 11 : i64} {
  func.func @_attention_pool_kernel(%arg0: i32, %arg1: i32, %arg2: memref<8x8x32xbf16, #tpu.memory_space<vmem>>, %arg3: memref<32x32xbf16, #tpu.memory_space<vmem>>, %arg4: memref<1x32xf32, #tpu.memory_space<vmem>>, %arg5: memref<1x32xf32, #tpu.memory_space<vmem>>, %arg6: memref<8x32xf32, #tpu.memory_space<vmem>>, %arg7: memref<8x1xf32, #tpu.memory_space<vmem>>, %arg8: memref<8x1xf32, #tpu.memory_space<vmem>>) attributes {dimension_semantics = [#tpu.dimension_semantics<parallel>, #tpu.dimension_semantics<arbitrary>], iteration_bounds = array<i64: 1, 1>, scalar_prefetch = 0 : i64, scratch_operands = 2 : i64, tpu.core_type = #tpu.core_type<tc>, window_params = [{transform_indices = @transform_0, window_bounds = array<i64: 8, 8, 32>}, {pipeline_mode = #tpu.pipeline_mode<synchronous>, transform_indices = @transform_1, window_bounds = array<i64: 32, 32>}, {pipeline_mode = #tpu.pipeline_mode<synchronous>, transform_indices = @transform_2, window_bounds = array<i64: 1, 32>}, {pipeline_mode = #tpu.pipeline_mode<synchronous>, transform_indices = @transform_3, window_bounds = array<i64: 1, 32>}, {transform_indices = @transform_4, window_bounds = array<i64: 8, 32>}]} {
    %c0_i32 = arith.constant 0 : i32
    %0 = arith.cmpi eq, %arg1, %c0_i32 : i32
    %1 = arith.extui %0 : i1 to i32
    %c0_i32_0 = arith.constant 0 : i32
    %2 = arith.cmpi ne, %1, %c0_i32_0 : i32
    scf.if %2 {
      %cst_27 = arith.constant 0xFF800000 : f32
      %48 = vector.broadcast %cst_27 : f32 to vector<8x1xf32>
      %c0_28 = arith.constant 0 : index
      %c0_29 = arith.constant 0 : index
      %49 = vector.load %arg7[%c0_28, %c0_29] : memref<8x1xf32, #tpu.memory_space<vmem>>, vector<8x1xf32>
      tpu.vector_store %arg7[%c0_28, %c0_29], %48 {strides = array<i32>} : memref<8x1xf32, #tpu.memory_space<vmem>>, vector<8x1xf32>,
      %cst_30 = arith.constant 0.000000e+00 : f32
      %50 = vector.broadcast %cst_30 : f32 to vector<8x1xf32>
      %c0_31 = arith.constant 0 : index
      %c0_32 = arith.constant 0 : index
      %51 = vector.load %arg8[%c0_31, %c0_32] : memref<8x1xf32, #tpu.memory_space<vmem>>, vector<8x1xf32>
      tpu.vector_store %arg8[%c0_31, %c0_32], %50 {strides = array<i32>} : memref<8x1xf32, #tpu.memory_space<vmem>>, vector<8x1xf32>,
      %cst_33 = arith.constant 0.000000e+00 : f32
      %52 = vector.broadcast %cst_33 : f32 to vector<8x32xf32>
      %c0_34 = arith.constant 0 : index
      %c0_35 = arith.constant 0 : index
      %53 = vector.load %arg6[%c0_34, %c0_35] : memref<8x32xf32, #tpu.memory_space<vmem>>, vector<8x32xf32>
      tpu.vector_store %arg6[%c0_34, %c0_35], %52 {strides = array<i32>} : memref<8x32xf32, #tpu.memory_space<vmem>>, vector<8x32xf32>,
    } else {
    }
    %c0 = arith.constant 0 : index
    %c0_1 = arith.constant 0 : index
    %c0_2 = arith.constant 0 : index
    %3 = vector.load %arg2[%c0, %c0_1, %c0_2] : memref<8x8x32xbf16, #tpu.memory_space<vmem>>, vector<8x8x32xbf16>
    %4 = vector.shape_cast %3 : vector<8x8x32xbf16> to vector<64x32xbf16>
    %c0_3 = arith.constant 0 : index
    %c0_4 = arith.constant 0 : index
    %5 = vector.load %arg3[%c0_3, %c0_4] : memref<32x32xbf16, #tpu.memory_space<vmem>>, vector<32x32xbf16>
    %cst = arith.constant dense<0.000000e+00> : vector<64x32xf32>
    %6 = tpu.matmul %4, %5, %cst {dimension_numbers = #tpu.dot_dimension_numbers<[1], [0], [0], [1], [0, 0, 1, 1], [], []>} : vector<64x32xbf16>, vector<32x32xbf16>, vector<64x32xf32> -> vector<64x32xf32>
    %c0_5 = arith.constant 0 : index
    %c0_6 = arith.constant 0 : index
    %7 = vector.load %arg4[%c0_5, %c0_6] : memref<1x32xf32, #tpu.memory_space<vmem>>, vector<1x32xf32>
    %8 = vector.broadcast %7 : vector<1x32xf32> to vector<64x32xf32>
    %9 = arith.addf %6, %8 : vector<64x32xf32>
    %10 = arith.truncf %9 : vector<64x32xf32> to vector<64x32xbf16>
    %11 = math.tanh %10 : vector<64x32xbf16>
    %12 = vector.shape_cast %11 : vector<64x32xbf16> to vector<8x8x32xbf16>
    %c0_7 = arith.constant 0 : index
    %c0_8 = arith.constant 0 : index
    %13 = vector.load %arg5[%c0_7, %c0_8] : memref<1x32xf32, #tpu.memory_space<vmem>>, vector<1x32xf32>
    %14 = arith.extf %12 : vector<8x8x32xbf16> to vector<8x8x32xf32>
    %15 = vector.shape_cast %13 : vector<1x32xf32> to vector<1x1x32xf32>
    %16 = vector.broadcast %15 : vector<1x1x32xf32> to vector<8x8x32xf32>
    %17 = arith.mulf %14, %16 : vector<8x8x32xf32>
    %cst_9 = arith.constant dense<0.000000e+00> : vector<8x8xf32>
    %18 = vector.multi_reduction <add>, %17, %cst_9 [2] : vector<8x8x32xf32> to vector<8x8xf32>
    %c0_10 = arith.constant 0 : index
    %c0_11 = arith.constant 0 : index
    %19 = vector.load %arg7[%c0_10, %c0_11] : memref<8x1xf32, #tpu.memory_space<vmem>>, vector<8x1xf32>
    %cst_12 = arith.constant dense<0xFF800000> : vector<8xf32>
    %20 = vector.multi_reduction <maximumf>, %18, %cst_12 [1] : vector<8x8xf32> to vector<8xf32>
    %21 = vector.shape_cast %20 : vector<8xf32> to vector<8x1xf32>
    %22 = arith.maximumf %19, %21 : vector<8x1xf32>
    %23 = arith.subf %19, %22 : vector<8x1xf32>
    %24 = math.exp %23 : vector<8x1xf32>
    %25 = vector.broadcast %22 : vector<8x1xf32> to vector<8x8xf32>
    %26 = arith.subf %18, %25 : vector<8x8xf32>
    %27 = math.exp %26 : vector<8x8xf32>
    %c0_13 = arith.constant 0 : index
    %c0_14 = arith.constant 0 : index
    %28 = vector.load %arg8[%c0_13, %c0_14] : memref<8x1xf32, #tpu.memory_space<vmem>>, vector<8x1xf32>
    %29 = arith.mulf %24, %28 : vector<8x1xf32>
    %cst_15 = arith.constant dense<0.000000e+00> : vector<8xf32>
    %30 = vector.multi_reduction <add>, %27, %cst_15 [1] : vector<8x8xf32> to vector<8xf32>
    %31 = vector.shape_cast %30 : vector<8xf32> to vector<8x1xf32>
    %32 = arith.addf %29, %31 : vector<8x1xf32>
    %c0_16 = arith.constant 0 : index
    %c0_17 = arith.constant 0 : index
    %33 = vector.load %arg8[%c0_16, %c0_17] : memref<8x1xf32, #tpu.memory_space<vmem>>, vector<8x1xf32>
    tpu.vector_store %arg8[%c0_16, %c0_17], %32 {strides = array<i32>} : memref<8x1xf32, #tpu.memory_space<vmem>>, vector<8x1xf32>,
    %c0_18 = arith.constant 0 : index
    %c0_19 = arith.constant 0 : index
    %34 = vector.load %arg6[%c0_18, %c0_19] : memref<8x32xf32, #tpu.memory_space<vmem>>, vector<8x32xf32>
    %35 = vector.broadcast %24 : vector<8x1xf32> to vector<8x32xf32>
    %36 = arith.mulf %35, %34 : vector<8x32xf32>
    %37 = arith.extf %3 : vector<8x8x32xbf16> to vector<8x8x32xf32>
    %38 = vector.shape_cast %27 : vector<8x8xf32> to vector<8x8x1xf32>
    %39 = vector.broadcast %38 : vector<8x8x1xf32> to vector<8x8x32xf32>
    %40 = arith.mulf %37, %39 : vector<8x8x32xf32>
    %cst_20 = arith.constant dense<0.000000e+00> : vector<8x32xf32>
    %41 = vector.multi_reduction <add>, %40, %cst_20 [1] : vector<8x8x32xf32> to vector<8x32xf32>
    %42 = arith.addf %36, %41 : vector<8x32xf32>
    %c0_21 = arith.constant 0 : index
    %c0_22 = arith.constant 0 : index
    %43 = vector.load %arg6[%c0_21, %c0_22] : memref<8x32xf32, #tpu.memory_space<vmem>>, vector<8x32xf32>
    tpu.vector_store %arg6[%c0_21, %c0_22], %42 {strides = array<i32>} : memref<8x32xf32, #tpu.memory_space<vmem>>, vector<8x32xf32>,
    %c0_23 = arith.constant 0 : index
    %c0_24 = arith.constant 0 : index
    %44 = vector.load %arg7[%c0_23, %c0_24] : memref<8x1xf32, #tpu.memory_space<vmem>>, vector<8x1xf32>
    tpu.vector_store %arg7[%c0_23, %c0_24], %22 {strides = array<i32>} : memref<8x1xf32, #tpu.memory_space<vmem>>, vector<8x1xf32>,
    %c0_i32_25 = arith.constant 0 : i32
    %45 = arith.cmpi eq, %arg1, %c0_i32_25 : i32
    %46 = arith.extui %45 : i1 to i32
    %c0_i32_26 = arith.constant 0 : i32
    %47 = arith.cmpi ne, %46, %c0_i32_26 : i32
    scf.if %47 {
      %c0_27 = arith.constant 0 : index
      %c0_28 = arith.constant 0 : index
      %48 = vector.load %arg6[%c0_27, %c0_28] : memref<8x32xf32, #tpu.memory_space<vmem>>, vector<8x32xf32>
      %c0_29 = arith.constant 0 : index
      %c0_30 = arith.constant 0 : index
      %49 = vector.load %arg8[%c0_29, %c0_30] : memref<8x1xf32, #tpu.memory_space<vmem>>, vector<8x1xf32>
      %50 = tpu.reciprocal %49 {approx = true} : vector<8x1xf32> -> vector<8x1xf32>
      %51 = vector.broadcast %50 : vector<8x1xf32> to vector<8x32xf32>
      %52 = arith.mulf %48, %51 : vector<8x32xf32>
      %c0_31 = arith.constant 0 : index
      %c0_32 = arith.constant 0 : index
      %53 = vector.load %arg6[%c0_31, %c0_32] : memref<8x32xf32, #tpu.memory_space<vmem>>, vector<8x32xf32>
      tpu.vector_store %arg6[%c0_31, %c0_32], %52 {strides = array<i32>} : memref<8x32xf32, #tpu.memory_space<vmem>>, vector<8x32xf32>,
    } else {
    }
    return
  }
  func.func @transform_0(%arg0: i32, %arg1: i32) -> (i32, i32, i32) {
    %c0_i32 = arith.constant 0 : i32
    %c0_i32_0 = arith.constant 0 : i32
    return %arg0, %arg1, %c0_i32 : i32, i32, i32
  }
  func.func @transform_1(%arg0: i32, %arg1: i32) -> (i32, i32) {
    %c0_i32 = arith.constant 0 : i32
    %c0_i32_0 = arith.constant 0 : i32
    %c0_i32_1 = arith.constant 0 : i32
    return %c0_i32, %c0_i32_0 : i32, i32
  }
  func.func @transform_2(%arg0: i32, %arg1: i32) -> (i32, i32) {
    %c0_i32 = arith.constant 0 : i32
    %c0_i32_0 = arith.constant 0 : i32
    %c0_i32_1 = arith.constant 0 : i32
    return %c0_i32, %c0_i32_0 : i32, i32
  }
  func.func @transform_3(%arg0: i32, %arg1: i32) -> (i32, i32) {
    %c0_i32 = arith.constant 0 : i32
    %c0_i32_0 = arith.constant 0 : i32
    %c0_i32_1 = arith.constant 0 : i32
    return %c0_i32, %c0_i32_0 : i32, i32
  }
  func.func @transform_4(%arg0: i32, %arg1: i32) -> (i32, i32) {
    %c0_i32 = arith.constant 0 : i32
    %c0_i32_0 = arith.constant 0 : i32
    return %arg0, %c0_i32 : i32, i32
  }
}

</mosaic_0001>

<llo_original>
// kernel: tpu_custom_call.1
$region0: #{tpu_custom_call.1}
  #allocation0 [shape = 'u32[]', space=smem, size = 0x4, offset = 0x4, fixed_abs, tag = 'smem constant byte address 0x4 - core index']
  #allocation1 [shape = 'u32[144,128]{1,0:T(1,128)}', space=vmem, size = 0x12000, scoped, tag = 'internal scratch']
  #allocation2 [shape = 'f32[8,1]{1,0:T(8,128)}', space=vmem, size = 0x1000, scoped, tag = 'scratch operand']
  #allocation3 [shape = 'f32[8,1]{1,0:T(8,128)}', space=vmem, size = 0x1000, scoped, tag = 'scratch operand']
  %s0 = inlined_call_operand.hbm [shape: bf16[8,8,32], index: 0, kind: input, shape index: {}]
  %s1 = inlined_call_operand.hbm [shape: bf16[32,32], index: 1, kind: input, shape index: {}]
  %s2 = inlined_call_operand.vmem [shape: f32[1,32], index: 2, kind: input, shape index: {}]
  %s3 = inlined_call_operand.vmem [shape: f32[1,32], index: 3, kind: input, shape index: {}]
  %s4 = inlined_call_operand.hbm [shape: f32[8,32], index: 4, kind: output, shape index: {}]
  %s5 = sld [smem:[#allocation0]]
  $region42: #{tpu_custom_call.1} parent=0
    _
  %s7 = ssub.s32 1, %s5
  %s8 = scalar_select 0, %s7, %s5
  $region1: #{tpu_custom_call.1} parent=0
    #allocation4 [shape = 'u8[16384]{0}', space=vmem, size = 0x4000, scoped, tag = 'input window, operand 0, single buffered']
    #allocation5 [shape = 's32[1]{0}', space=sflag, size = 0x4, scoped, tag = 'scoped memory for tpu_custom_call.1']
    #allocation6 [shape = 's32[1]{0}', space=sflag, size = 0x4, scoped, tag = 'scoped memory for tpu_custom_call.1']
    #allocation7 [shape = 'u8[8192]{0}', space=vmem, size = 0x2000, scoped, tag = 'input window, operand 1, single buffered']
    #allocation8 [shape = 's32[1]{0}', space=sflag, size = 0x4, scoped, tag = 'scoped memory for tpu_custom_call.1']
    #allocation9 [shape = 'u8[4096]{0}', space=vmem, size = 0x1000, scoped, tag = 'output window, operand 0, single buffered']
    %9 = vsyncpa [#allocation5], 0
    %10 = vsyncpa [#allocation8], 0
    %11 = vsyncpa [#allocation6], 0
    // Predicated region
    $region2: #{tpu_custom_call.1} parent=1 // pred_check
      _
    $region3: #{tpu_custom_call.1} parent=1 // pred_check_branch
      %13 = sbr.rel (0) target = $region5
    $region4: #{tpu_custom_call.1} parent=1 // pred_region
      %s15 = ssub.s32 512, 512
      %16 = vsyncadd [#allocation5], %s15
      %s17 = sshll.u32 [#allocation4], 4
      %s18 = int_to_ptr.vmem [resolvable:$true] %s17
      %23 = dma.hbm_to_vmem [thread:$0]  %s0, 512, %s18, [#allocation5], 64, 64, 4
    $region5: #{tpu_custom_call.1} parent=1 // pred_fallthru
      _
    // Predicated region
    $region6: #{tpu_custom_call.1} parent=1 // pred_check
      _
    $region7: #{tpu_custom_call.1} parent=1 // pred_check_branch
      %25 = sbr.rel (0) target = $region9
    $region8: #{tpu_custom_call.1} parent=1 // pred_region
      %s27 = ssub.s32 256, 256
      %28 = vsyncadd [#allocation8], %s27
      %s29 = sshll.u32 [#allocation7], 4
      %s30 = int_to_ptr.vmem [resolvable:$true] %s29
      %35 = dma.hbm_to_vmem [thread:$0]  %s1, 256, %s30, [#allocation8], 64, 64, 4
    $region9: #{tpu_custom_call.1} parent=1 // pred_fallthru
      _
    // Predicated region
    $region10: #{tpu_custom_call.1} parent=1 // pred_check
      _
    $region11: #{tpu_custom_call.1} parent=1 // pred_check_branch
      %37 = sbr.rel (0) target = $region13
    $region12: #{tpu_custom_call.1} parent=1 // pred_region
      _
    $region13: #{tpu_custom_call.1} parent=1 // pred_fallthru
      _
    // Predicated region
    $region14: #{tpu_custom_call.1} parent=1 // pred_check
      _
    $region15: #{tpu_custom_call.1} parent=1 // pred_check_branch
      %39 = sbr.rel (0) target = $region17
    $region16: #{tpu_custom_call.1} parent=1 // pred_region
      _
    $region17: #{tpu_custom_call.1} parent=1 // pred_fallthru
      _
    // Predicated region
    $region18: #{tpu_custom_call.1} parent=1 // pred_check
      _
    $region19: #{tpu_custom_call.1} parent=1 // pred_check_branch
      %41 = sbr.rel (0) target = $region21
    $region20: #{tpu_custom_call.1} parent=1 // pred_region
      %42 = dma.done [#allocation5], 512
    $region21: #{tpu_custom_call.1} parent=1 // pred_fallthru
      _
    // Predicated region
    $region22: #{tpu_custom_call.1} parent=1 // pred_check
      _
    $region23: #{tpu_custom_call.1} parent=1 // pred_check_branch
      %44 = sbr.rel (0) target = $region25
    $region24: #{tpu_custom_call.1} parent=1 // pred_region
      %45 = dma.done [#allocation8], 256
    $region25: #{tpu_custom_call.1} parent=1 // pred_fallthru
      _
    %p47 = scmp.eq.s32.totalorder 0, 0
    // Predicated region
    $region26: #{tpu_custom_call.1} parent=1 // pred_check
      %p48 = pneg %p47
    $region27: #{tpu_custom_call.1} parent=1 // pred_check_branch
      %50 = sbr.rel (%p48) target = $region29
    $region28: #{tpu_custom_call.1} parent=1 // pred_region
      %vm51 = vcmask 7168
      %52 = vst.msk [vmem:[#allocation2] sm:$0xff] %vm51, -inf
      %53 = vst.msk [vmem:[#allocation3] sm:$0xff] %vm51, 0.0
      %vm54 = vcmask 261120
      %55 = vst.msk [vmem:[#allocation9] sm:$0xff] %vm54, 0.0
    $region29: #{tpu_custom_call.1} parent=1 // pred_fallthru
      _
    %v56 = vld [vmem:[#allocation4] sm:$0xf]
    %v57 = vld [vmem:[#allocation4 + $0x4] sm:$0xf]
    %v58 = vld [vmem:[#allocation4 + $0x8] sm:$0xf]
    %v59 = vld [vmem:[#allocation4 + $0xc] sm:$0xf]
    %v60 = vld [vmem:[#allocation4 + $0x10] sm:$0xf]
    %v61 = vld [vmem:[#allocation4 + $0x14] sm:$0xf]
    %v62 = vld [vmem:[#allocation4 + $0x18] sm:$0xf]
    %v63 = vld [vmem:[#allocation4 + $0x1c] sm:$0xf]
    %v64 = vld [vmem:[#allocation7] sm:$0xf]
    %v65 = vld [vmem:[#allocation7 + $0x4] sm:$0xf]
    %v66 = vld [vmem:[#allocation7 + $0x8] sm:$0xf]
    %v67 = vld [vmem:[#allocation7 + $0xc] sm:$0xf]
    %v68 = vld [vmem:[%s2] sm:$0x1]
    %v70 = vlaneseq
    %v71 = vshrl.u32 %v70, 7
    %v72 = vsub.s32 0, %v71
    %v73 = vrot.slane %v68, %v72
    %v83 = vunpack.c.l.b16 %v56
    %v84 = vunpack.c.l.b16 %v57
    %v85 = vunpack.c.l.b16 %v58
    %v86 = vunpack.c.l.b16 %v59
    %v87 = vunpack.c.l.b16 %v60
    %v88 = vunpack.c.l.b16 %v61
    %v89 = vunpack.c.l.b16 %v62
    %v90 = vunpack.c.l.b16 %v63
    %v91 = vpack.c.b16 %v84, %v83
    %v92 = vpack.c.b16 %v86, %v85
    %v93 = vpack.c.b16 %v88, %v87
    %v94 = vpack.c.b16 %v90, %v89
    %v99 = vunpack.c.l.b16 %v64
    %v100 = vunpack.c.l.b16 %v65
    %v101 = vunpack.c.l.b16 %v66
    %v102 = vunpack.c.l.b16 %v67
    %v103 = vpack.c.b16 %v100, %v99
    %v104 = vpack.c.b16 %v102, %v101
    %vm107 = vcmask 261120
    %v109 = vsel %vm107, %v91, 0
    %v112 = vsel %vm107, %v92, 0
    %v115 = vsel %vm107, %v93, 0
    %v118 = vsel %vm107, %v94, 0
    %120 = vmatprep.subr.bf16.mxu0 0
    %121 = vmatpush1.bf16.msra.mxu0 0
    %122 = vmatprep.subr.bf16.mxu0 0
    %123 = vmatpush1.bf16.msra.mxu0 0
    %124 = vmatprep.subr.bf16.mxu0 0
    %125 = vmatpush1.bf16.msra.mxu0 0
    %126 = vmatprep.subr.bf16.mxu0 0
    %127 = vmatpush1.bf16.msra.mxu0 0
    %128 = vmatprep.subr.bf16.mxu0 0
    %129 = vmatpush1.bf16.msra.mxu0 0
    %130 = vmatprep.subr.bf16.mxu0 0
    %131 = vmatpush1.bf16.msra.mxu0 0
    %132 = vmatprep.subr.bf16.mxu0 0
    %133 = vmatpush1.bf16.msra.mxu0 %v104
    %134 = vmatprep.subr.bf16.mxu0 0
    %135 = vmatpush1.bf16.msra.mxu0 %v103
    %136 = vmatprep.subr.bf16.mxu0 0
    %137 = vmatpush2.bf16.msra.mxu0 0
    %138 = vmatprep.subr.bf16.mxu0 0
    %139 = vmatpush2.bf16.msra.mxu0 0
    %140 = vmatprep.subr.bf16.mxu0 0
    %141 = vmatpush2.bf16.msra.mxu0 0
    %142 = vmatprep.subr.bf16.mxu0 0
    %143 = vmatpush2.bf16.msra.mxu0 0
    %144 = vmatprep.subr.bf16.mxu0 0
    %145 = vmatpush2.bf16.msra.mxu0 0
    %146 = vmatprep.subr.bf16.mxu0 0
    %147 = vmatpush2.bf16.msra.mxu0 0
    %148 = vmatprep.subr.bf16.mxu0 0
    %149 = vmatpush2.bf16.msra.mxu0 0
    %150 = vmatprep.subr.bf16.mxu0 0
    %151 = vmatpush2.bf16.msra.mxu0 0
    %152 = vmatprep.mubr.bf16.mxu0 0
    %153 = vmatmul.mubr.bf16.gmra.mxu0 %v109
    %v154 = vpop.f32.mrf.mxu0
    %v155 = vadd.f32 %v73, %v154
    %v156 = vpop.f32.mrf.mxu0
    %v157 = vpop.f32.mrf.mxu0
    %v158 = vadd.f32 %v73, %v157
    %v159 = vpop.f32.mrf.mxu0
    %160 = vmatprep.mubr.bf16.mxu0 0
    %161 = vmatmul.mubr.bf16.gmra.mxu0 %v112
    %v162 = vpop.f32.mrf.mxu0
    %v163 = vadd.f32 %v73, %v162
    %v164 = vpop.f32.mrf.mxu0
    %v165 = vpop.f32.mrf.mxu0
    %v166 = vadd.f32 %v73, %v165
    %v167 = vpop.f32.mrf.mxu0
    %168 = vmatprep.mubr.bf16.mxu0 0
    %169 = vmatmul.mubr.bf16.gmra.mxu0 %v115
    %v170 = vpop.f32.mrf.mxu0
    %v171 = vadd.f32 %v73, %v170
    %v172 = vpop.f32.mrf.mxu0
    %v173 = vpop.f32.mrf.mxu0
    %v174 = vadd.f32 %v73, %v173
    %v175 = vpop.f32.mrf.mxu0
    %176 = vmatprep.mubr.bf16.mxu0 0
    %177 = vmatmul.mubr.bf16.gmra.mxu0 %v118
    %v178 = vpop.f32.mrf.mxu0
    %v179 = vadd.f32 %v73, %v178
    %v180 = vpop.f32.mrf.mxu0
    %v181 = vpop.f32.mrf.mxu0
    %v182 = vadd.f32 %v73, %v181
    %v183 = vpop.f32.mrf.mxu0
    %184 = vdwg.mxu0
    %v185 = vpack.c.bf16 %v158, %v155
    %v186 = vpack.c.bf16 %v166, %v163
    %v187 = vpack.c.bf16 %v174, %v171
    %v188 = vpack.c.bf16 %v182, %v179
    %v189 = vtanh.bf16.pop %v185
    %v190 = vtanh.bf16.pop %v186
    %v191 = vtanh.bf16.pop %v187
    %v192 = vtanh.bf16.pop %v188
    %v197 = vunpack.c.l.b16 %v189
    %v198 = vunpack.c.h.b16 %v189
    %v199 = vunpack.c.l.b16 %v190
    %v200 = vunpack.c.h.b16 %v190
    %v201 = vunpack.c.l.b16 %v191
    %v202 = vunpack.c.h.b16 %v191
    %v203 = vunpack.c.l.b16 %v192
    %v204 = vunpack.c.h.b16 %v192
    %v205 = vpack.c.b16 %v197, %v197
    %v206 = vpack.c.b16 %v198, %v198
    %v207 = vpack.c.b16 %v199, %v199
    %v208 = vpack.c.b16 %v200, %v200
    %v209 = vpack.c.b16 %v201, %v201
    %v210 = vpack.c.b16 %v202, %v202
    %v211 = vpack.c.b16 %v203, %v203
    %v212 = vpack.c.b16 %v204, %v204
    %v221 = vld [vmem:[%s3] sm:$0x1]
    %v222 = vunpack.c.l.bf16 %v205
    %v223 = vunpack.c.l.bf16 %v206
    %v224 = vunpack.c.l.bf16 %v207
    %v225 = vunpack.c.l.bf16 %v208
    %v226 = vunpack.c.l.bf16 %v209
    %v227 = vunpack.c.l.bf16 %v210
    %v228 = vunpack.c.l.bf16 %v211
    %v229 = vunpack.c.l.bf16 %v212
    %v231 = vlaneseq
    %v232 = vshrl.u32 %v231, 7
    %v233 = vsub.s32 0, %v232
    %v234 = vrot.slane %v221, %v233
    %v236 = vmul.f32 %v222, %v234
    %v237 = vmul.f32 %v223, %v234
    %v238 = vmul.f32 %v224, %v234
    %v239 = vmul.f32 %v225, %v234
    %v240 = vmul.f32 %v226, %v234
    %v241 = vmul.f32 %v227, %v234
    %v242 = vmul.f32 %v228, %v234
    %v243 = vmul.f32 %v229, %v234
    %v244 = vsel %vm107, %v236, 0.0
    %245 = vadd.xlane.f32.xlu0 %v244
    %v246 = vpop.xlane.xlu0 %245
    %v247 = vsel %vm107, %v237, 0.0
    %248 = vadd.xlane.f32.xlu0 %v247
    %v249 = vpop.xlane.xlu0 %248
    %v250 = vsel %vm107, %v238, 0.0
    %251 = vadd.xlane.f32.xlu0 %v250
    %v252 = vpop.xlane.xlu0 %251
    %v253 = vsel %vm107, %v239, 0.0
    %254 = vadd.xlane.f32.xlu0 %v253
    %v255 = vpop.xlane.xlu0 %254
    %v256 = vsel %vm107, %v240, 0.0
    %257 = vadd.xlane.f32.xlu0 %v256
    %v258 = vpop.xlane.xlu0 %257
    %v259 = vsel %vm107, %v241, 0.0
    %260 = vadd.xlane.f32.xlu0 %v259
    %v261 = vpop.xlane.xlu0 %260
    %v262 = vsel %vm107, %v242, 0.0
    %263 = vadd.xlane.f32.xlu0 %v262
    %v264 = vpop.xlane.xlu0 %263
    %v265 = vsel %vm107, %v243, 0.0
    %266 = vadd.xlane.f32.xlu0 %v265
    %v267 = vpop.xlane.xlu0 %266
    %v268 = vld [vmem:[#allocation2] sm:$0xff]
    %v277 = vlaneseq
    %v278 = vand.u32 %v277, 127
    %v279 = vlaneseq
    %v280 = vshrl.u32 %v279, 7
    %v281 = vsub.s32 %v278, %v280
    %v282 = vrot.slane %v246, %v281
    %v283 = vlaneseq
    %v284 = vshrl.u32 %v283, 7
    %v285 = vsub.s32 %v278, %v284
    %v286 = vrot.slane %v249, %v285
    %v287 = vlaneseq
    %v288 = vshrl.u32 %v287, 7
    %v289 = vsub.s32 %v278, %v288
    %v290 = vrot.slane %v252, %v289
    %v291 = vlaneseq
    %v292 = vshrl.u32 %v291, 7
    %v293 = vsub.s32 %v278, %v292
    %v294 = vrot.slane %v255, %v293
    %v295 = vlaneseq
    %v296 = vshrl.u32 %v295, 7
    %v297 = vsub.s32 %v278, %v296
    %v298 = vrot.slane %v258, %v297
    %v299 = vlaneseq
    %v300 = vshrl.u32 %v299, 7
    %v301 = vsub.s32 %v278, %v300
    %v302 = vrot.slane %v261, %v301
    %v303 = vlaneseq
    %v304 = vshrl.u32 %v303, 7
    %v305 = vsub.s32 %v278, %v304
    %v306 = vrot.slane %v264, %v305
    %v307 = vlaneseq
    %v308 = vshrl.u32 %v307, 7
    %v309 = vsub.s32 %v278, %v308
    %v310 = vrot.slane %v267, %v309
    %vm311 = vcmask 1041409
    %v312 = vsel %vm311, %v286, %v282
    %vm313 = vcmask 1042434
    %v314 = vsel %vm313, %v290, %v312
    %vm315 = vcmask 1043459
    %v316 = vsel %vm315, %v294, %v314
    %vm317 = vcmask 1044484
    %v318 = vsel %vm317, %v298, %v316
    %vm319 = vcmask 1045509
    %v320 = vsel %vm319, %v302, %v318
    %vm321 = vcmask 1046534
    %v322 = vsel %vm321, %v306, %v320
    %vm323 = vcmask 1047559
    %v324 = vsel %vm323, %v310, %v322
    %vm326 = vcmask 64512
    %v327 = vsel %vm326, %v324, -inf
    %328 = vmax.xlane.f32.xlu0 %v327
    %v329 = vpop.xlane.xlu0 %328
    %v330 = vmax.f32 %v268, %v329
    %v331 = vsub.f32 %v268, %v330
    %v332 = vmul.f32 %v331, 1.442695
    %v333 = vpow.pop %v332
    %335 = vset.pattern.permute.xlu0 0
    %336 = vperm.xlu0 %335, %v330
    %v337 = vpop.permute.xlu0 %336
    %v338 = vlaneseq
    %v339 = vshrl.u32 %v338, 7
    %v340 = vsub.s32 0, %v339
    %v341 = vrot.slane %v337, %v340
    %v342 = vlaneseq
    %v343 = vshrl.u32 %v342, 7
    %v344 = vsub.s32 1, %v343
    %v345 = vrot.slane %v337, %v344
    %v346 = vlaneseq
    %v347 = vshrl.u32 %v346, 7
    %v348 = vsub.s32 2, %v347
    %v349 = vrot.slane %v337, %v348
    %v350 = vlaneseq
    %v351 = vshrl.u32 %v350, 7
    %v352 = vsub.s32 3, %v351
    %v353 = vrot.slane %v337, %v352
    %v354 = vlaneseq
    %v355 = vshrl.u32 %v354, 7
    %v356 = vsub.s32 4, %v355
    %v357 = vrot.slane %v337, %v356
    %v358 = vlaneseq
    %v359 = vshrl.u32 %v358, 7
    %v360 = vsub.s32 5, %v359
    %v361 = vrot.slane %v337, %v360
    %v362 = vlaneseq
    %v363 = vshrl.u32 %v362, 7
    %v364 = vsub.s32 6, %v363
    %v365 = vrot.slane %v337, %v364
    %v366 = vlaneseq
    %v367 = vshrl.u32 %v366, 7
    %v368 = vsub.s32 7, %v367
    %v369 = vrot.slane %v337, %v368
    %v378 = vsub.f32 %v246, %v341
    %v379 = vsub.f32 %v249, %v345
    %v380 = vsub.f32 %v252, %v349
    %v381 = vsub.f32 %v255, %v353
    %v382 = vsub.f32 %v258, %v357
    %v383 = vsub.f32 %v261, %v361
    %v384 = vsub.f32 %v264, %v365
    %v385 = vsub.f32 %v267, %v369
    %v386 = vmul.f32 %v378, 1.442695
    %v387 = vpow.pop %v386
    %v388 = vmul.f32 %v379, 1.442695
    %v389 = vpow.pop %v388
    %v390 = vmul.f32 %v380, 1.442695
    %v391 = vpow.pop %v390
    %v392 = vmul.f32 %v381, 1.442695
    %v393 = vpow.pop %v392
    %v394 = vmul.f32 %v382, 1.442695
    %v395 = vpow.pop %v394
    %v396 = vmul.f32 %v383, 1.442695
    %v397 = vpow.pop %v396
    %v398 = vmul.f32 %v384, 1.442695
    %v399 = vpow.pop %v398
    %v400 = vmul.f32 %v385, 1.442695
    %v401 = vpow.pop %v400
    %v402 = vld [vmem:[#allocation3] sm:$0xff]
    %v403 = vmul.f32 %v333, %v402
    %412 = vset.pattern.permute.xlu0 0
    %413 = vperm.xlu0 %412, %v387
    %v414 = vpop.permute.xlu0 %413
    %415 = vset.pattern.permute.xlu0 0
    %416 = vperm.xlu0 %415, %v389
    %v417 = vpop.permute.xlu0 %416
    %418 = vset.pattern.permute.xlu0 0
    %419 = vperm.xlu0 %418, %v391
    %v420 = vpop.permute.xlu0 %419
    %421 = vset.pattern.permute.xlu0 0
    %422 = vperm.xlu0 %421, %v393
    %v423 = vpop.permute.xlu0 %422
    %424 = vset.pattern.permute.xlu0 0
    %425 = vperm.xlu0 %424, %v395
    %v426 = vpop.permute.xlu0 %425
    %427 = vset.pattern.permute.xlu0 0
    %428 = vperm.xlu0 %427, %v397
    %v429 = vpop.permute.xlu0 %428
    %430 = vset.pattern.permute.xlu0 0
    %431 = vperm.xlu0 %430, %v399
    %v432 = vpop.permute.xlu0 %431
    %433 = vset.pattern.permute.xlu0 0
    %434 = vperm.xlu0 %433, %v401
    %v435 = vpop.permute.xlu0 %434
    %v436 = vlaneseq
    %v437 = vshrl.u32 %v436, 7
    %v438 = vsub.s32 %v278, %v437
    %v439 = vrot.slane %v414, %v438
    %v440 = vlaneseq
    %v441 = vshrl.u32 %v440, 7
    %v442 = vsub.s32 %v278, %v441
    %v443 = vrot.slane %v417, %v442
    %v444 = vlaneseq
    %v445 = vshrl.u32 %v444, 7
    %v446 = vsub.s32 %v278, %v445
    %v447 = vrot.slane %v420, %v446
    %v448 = vlaneseq
    %v449 = vshrl.u32 %v448, 7
    %v450 = vsub.s32 %v278, %v449
    %v451 = vrot.slane %v423, %v450
    %v452 = vlaneseq
    %v453 = vshrl.u32 %v452, 7
    %v454 = vsub.s32 %v278, %v453
    %v455 = vrot.slane %v426, %v454
    %v456 = vlaneseq
    %v457 = vshrl.u32 %v456, 7
    %v458 = vsub.s32 %v278, %v457
    %v459 = vrot.slane %v429, %v458
    %v460 = vlaneseq
    %v461 = vshrl.u32 %v460, 7
    %v462 = vsub.s32 %v278, %v461
    %v463 = vrot.slane %v432, %v462
    %v464 = vlaneseq
    %v465 = vshrl.u32 %v464, 7
    %v466 = vsub.s32 %v278, %v465
    %v467 = vrot.slane %v435, %v466
    %v468 = vsel %vm311, %v443, %v439
    %v469 = vsel %vm313, %v447, %v468
    %v470 = vsel %vm315, %v451, %v469
    %v471 = vsel %vm317, %v455, %v470
    %v472 = vsel %vm319, %v459, %v471
    %v473 = vsel %vm321, %v463, %v472
    %v474 = vsel %vm323, %v467, %v473
    %v476 = vsel %vm326, %v474, 0.0
    %477 = vadd.xlane.f32.xlu0 %v476
    %v478 = vpop.xlane.xlu0 %477
    %v479 = vadd.f32 %v403, %v478
    %vm480 = vcmask 7168
    %481 = vst.msk [vmem:[#allocation3] sm:$0xff] %vm480, %v479
    %v482 = vld [vmem:[#allocation9] sm:$0xff]
    %484 = vset.pattern.permute.xlu0 0
    %485 = vperm.xlu0 %484, %v333
    %v486 = vpop.permute.xlu0 %485
    %v488 = vmul.f32 %v486, %v482
    %v489 = vunpack.c.l.bf16 %v56
    %v490 = vunpack.c.l.bf16 %v57
    %v491 = vunpack.c.l.bf16 %v58
    %v492 = vunpack.c.l.bf16 %v59
    %v493 = vunpack.c.l.bf16 %v60
    %v494 = vunpack.c.l.bf16 %v61
    %v495 = vunpack.c.l.bf16 %v62
    %v496 = vunpack.c.l.bf16 %v63
    %v505 = vmul.f32 %v489, %v414
    %v506 = vmul.f32 %v490, %v417
    %v507 = vmul.f32 %v491, %v420
    %v508 = vmul.f32 %v492, %v423
    %v509 = vmul.f32 %v493, %v426
    %v510 = vmul.f32 %v494, %v429
    %v511 = vmul.f32 %v495, %v432
    %v512 = vmul.f32 %v496, %v435
    %v513 = vsel %vm107, %v505, 0.0
    %v514 = vrot.slane %v513, 4
    %v515 = vadd.f32 %v513, %v514
    %v516 = vrot.slane %v515, 2
    %v517 = vadd.f32 %v515, %v516
    %v518 = vrot.slane %v517, 1
    %v519 = vadd.f32 %v517, %v518
    %v520 = vsel %vm107, %v506, 0.0
    %v521 = vrot.slane %v520, 4
    %v522 = vadd.f32 %v520, %v521
    %v523 = vrot.slane %v522, 2
    %v524 = vadd.f32 %v522, %v523
    %v525 = vrot.slane %v524, 1
    %v526 = vadd.f32 %v524, %v525
    %v527 = vsel %vm107, %v507, 0.0
    %v528 = vrot.slane %v527, 4
    %v529 = vadd.f32 %v527, %v528
    %v530 = vrot.slane %v529, 2
    %v531 = vadd.f32 %v529, %v530
    %v532 = vrot.slane %v531, 1
    %v533 = vadd.f32 %v531, %v532
    %v534 = vsel %vm107, %v508, 0.0
    %v535 = vrot.slane %v534, 4
    %v536 = vadd.f32 %v534, %v535
    %v537 = vrot.slane %v536, 2
    %v538 = vadd.f32 %v536, %v537
    %v539 = vrot.slane %v538, 1
    %v540 = vadd.f32 %v538, %v539
    %v541 = vsel %vm107, %v509, 0.0
    %v542 = vrot.slane %v541, 4
    %v543 = vadd.f32 %v541, %v542
    %v544 = vrot.slane %v543, 2
    %v545 = vadd.f32 %v543, %v544
    %v546 = vrot.slane %v545, 1
    %v547 = vadd.f32 %v545, %v546
    %v548 = vsel %vm107, %v510, 0.0
    %v549 = vrot.slane %v548, 4
    %v550 = vadd.f32 %v548, %v549
    %v551 = vrot.slane %v550, 2
    %v552 = vadd.f32 %v550, %v551
    %v553 = vrot.slane %v552, 1
    %v554 = vadd.f32 %v552, %v553
    %v555 = vsel %vm107, %v511, 0.0
    %v556 = vrot.slane %v555, 4
    %v557 = vadd.f32 %v555, %v556
    %v558 = vrot.slane %v557, 2
    %v559 = vadd.f32 %v557, %v558
    %v560 = vrot.slane %v559, 1
    %v561 = vadd.f32 %v559, %v560
    %v562 = vsel %vm107, %v512, 0.0
    %v563 = vrot.slane %v562, 4
    %v564 = vadd.f32 %v562, %v563
    %v565 = vrot.slane %v564, 2
    %v566 = vadd.f32 %v564, %v565
    %v567 = vrot.slane %v566, 1
    %v568 = vadd.f32 %v566, %v567
    %v577 = vsel %vm311, %v526, %v519
    %v578 = vsel %vm313, %v533, %v577
    %v579 = vsel %vm315, %v540, %v578
    %v580 = vsel %vm317, %v547, %v579
    %v581 = vsel %vm319, %v554, %v580
    %v582 = vsel %vm321, %v561, %v581
    %v583 = vsel %vm323, %v568, %v582
    %v585 = vadd.f32 %v488, %v583
    %586 = vst.msk [vmem:[#allocation9] sm:$0xff] %vm107, %v585
    %587 = vst.msk [vmem:[#allocation2] sm:$0xff] %vm480, %v330
    // Predicated region
    $region30: #{tpu_custom_call.1} parent=1 // pred_check
      %p588 = pneg %p47
    $region31: #{tpu_custom_call.1} parent=1 // pred_check_branch
      %590 = sbr.rel (%p588) target = $region33
    $region32: #{tpu_custom_call.1} parent=1 // pred_region
      %v591 = vld [vmem:[#allocation9] sm:$0xff]
      %v592 = vld [vmem:[#allocation3] sm:$0xff]
      %v593 = vrcp.pop %v592
      %595 = vset.pattern.permute.xlu0 0
      %596 = vperm.xlu0 %595, %v593
      %v597 = vpop.permute.xlu0 %596
      %v599 = vmul.f32 %v591, %v597
      %600 = vst.msk [vmem:[#allocation9] sm:$0xff] %vm107, %v599
    $region33: #{tpu_custom_call.1} parent=1 // pred_fallthru
      _
    // Predicated region
    $region34: #{tpu_custom_call.1} parent=1 // pred_check
      _
    $region35: #{tpu_custom_call.1} parent=1 // pred_check_branch
      %602 = sbr.rel (0) target = $region37
    $region36: #{tpu_custom_call.1} parent=1 // pred_region
      %s604 = ssub.s32 128, 128
      %605 = vsyncadd [#allocation6], %s604
      %s607 = sshll.u32 [#allocation9], 4
      %s608 = int_to_ptr.vmem [resolvable:$true] %s607
      %610 = dma.vmem_to_hbm [thread:$0]  %s608, 128, %s4, [#allocation6]
    $region37: #{tpu_custom_call.1} parent=1 // pred_fallthru
      _
    // Predicated region
    $region38: #{tpu_custom_call.1} parent=1 // pred_check
      _
    $region39: #{tpu_custom_call.1} parent=1 // pred_check_branch
      %612 = sbr.rel (0) target = $region41
    $region40: #{tpu_custom_call.1} parent=1 // pred_region
      %613 = dma.done [#allocation6], 128
    $region41: #{tpu_custom_call.1} parent=1 // pred_fallthru
      _
    %614 = vsyncpa [#allocation5], 1
    %615 = vsyncpa [#allocation8], 1
    %616 = vsyncpa [#allocation6], 1

// kernel: tpu_custom_call.1
$region0: #{tpu_custom_call.1}
  #allocation0 [shape = 'u32[]', space=smem, size = 0x4, offset = 0x4, fixed_abs, tag = 'smem constant byte address 0x4 - core index']
  #allocation1 [shape = 'u32[144,128]{1,0:T(1,128)}', space=vmem, size = 0x12000, scoped, tag = 'internal scratch']
  #allocation2 [shape = 'f32[8,1]{1,0:T(8,128)}', space=vmem, size = 0x1000, scoped, tag = 'scratch operand']
  #allocation3 [shape = 'f32[8,1]{1,0:T(8,128)}', space=vmem, size = 0x1000, scoped, tag = 'scratch operand']
  %s0 = inlined_call_operand.hbm [shape: bf16[8,8,32], index: 0, kind: input, shape index: {}]
  %s1 = inlined_call_operand.hbm [shape: bf16[32,32], index: 1, kind: input, shape index: {}]
  %s2 = inlined_call_operand.vmem [shape: f32[1,32], index: 2, kind: input, shape index: {}]
  %s3 = inlined_call_operand.vmem [shape: f32[1,32], index: 3, kind: input, shape index: {}]
  %s4 = inlined_call_operand.hbm [shape: f32[8,32], index: 4, kind: output, shape index: {}]
  %s5 = sld [smem:[#allocation0]]
  $region42: #{tpu_custom_call.1} parent=0
    _
  %s7 = ssub.s32 1, %s5
  %s8 = scalar_select 0, %s7, %s5
  $region1: #{tpu_custom_call.1} parent=0
    #allocation4 [shape = 'u8[16384]{0}', space=vmem, size = 0x4000, scoped, tag = 'input window, operand 0, single buffered']
    #allocation5 [shape = 's32[1]{0}', space=sflag, size = 0x4, scoped, tag = 'scoped memory for tpu_custom_call.1']
    #allocation6 [shape = 's32[1]{0}', space=sflag, size = 0x4, scoped, tag = 'scoped memory for tpu_custom_call.1']
    #allocation7 [shape = 'u8[8192]{0}', space=vmem, size = 0x2000, scoped, tag = 'input window, operand 1, single buffered']
    #allocation8 [shape = 's32[1]{0}', space=sflag, size = 0x4, scoped, tag = 'scoped memory for tpu_custom_call.1']
    #allocation9 [shape = 'u8[4096]{0}', space=vmem, size = 0x1000, scoped, tag = 'output window, operand 0, single buffered']
    %9 = vsyncpa [#allocation5], 0
    %10 = vsyncpa [#allocation8], 0
    %11 = vsyncpa [#allocation6], 0
    // Predicated region
    $region2: #{tpu_custom_call.1} parent=1 // pred_check
      _
    $region3: #{tpu_custom_call.1} parent=1 // pred_check_branch
      %13 = sbr.rel (0) target = $region5
    $region4: #{tpu_custom_call.1} parent=1 // pred_region
      %s15 = ssub.s32 512, 512
      %16 = vsyncadd [#allocation5], %s15
      %s17 = sshll.u32 [#allocation4], 4
      %s18 = int_to_ptr.vmem [resolvable:$true] %s17
      %23 = dma.hbm_to_vmem [thread:$0]  %s0, 512, %s18, [#allocation5], 64, 64, 4
    $region5: #{tpu_custom_call.1} parent=1 // pred_fallthru
      _
    // Predicated region
    $region6: #{tpu_custom_call.1} parent=1 // pred_check
      _
    $region7: #{tpu_custom_call.1} parent=1 // pred_check_branch
      %25 = sbr.rel (0) target = $region9
    $region8: #{tpu_custom_call.1} parent=1 // pred_region
      %s27 = ssub.s32 256, 256
      %28 = vsyncadd [#allocation8], %s27
      %s29 = sshll.u32 [#allocation7], 4
      %s30 = int_to_ptr.vmem [resolvable:$true] %s29
      %35 = dma.hbm_to_vmem [thread:$0]  %s1, 256, %s30, [#allocation8], 64, 64, 4
    $region9: #{tpu_custom_call.1} parent=1 // pred_fallthru
      _
    // Predicated region
    $region10: #{tpu_custom_call.1} parent=1 // pred_check
      _
    $region11: #{tpu_custom_call.1} parent=1 // pred_check_branch
      %37 = sbr.rel (0) target = $region13
    $region12: #{tpu_custom_call.1} parent=1 // pred_region
      _
    $region13: #{tpu_custom_call.1} parent=1 // pred_fallthru
      _
    // Predicated region
    $region14: #{tpu_custom_call.1} parent=1 // pred_check
      _
    $region15: #{tpu_custom_call.1} parent=1 // pred_check_branch
      %39 = sbr.rel (0) target = $region17
    $region16: #{tpu_custom_call.1} parent=1 // pred_region
      _
    $region17: #{tpu_custom_call.1} parent=1 // pred_fallthru
      _
    // Predicated region
    $region18: #{tpu_custom_call.1} parent=1 // pred_check
      _
    $region19: #{tpu_custom_call.1} parent=1 // pred_check_branch
      %41 = sbr.rel (0) target = $region21
    $region20: #{tpu_custom_call.1} parent=1 // pred_region
      %42 = dma.done [#allocation5], 512
    $region21: #{tpu_custom_call.1} parent=1 // pred_fallthru
      _
    // Predicated region
    $region22: #{tpu_custom_call.1} parent=1 // pred_check
      _
    $region23: #{tpu_custom_call.1} parent=1 // pred_check_branch
      %44 = sbr.rel (0) target = $region25
    $region24: #{tpu_custom_call.1} parent=1 // pred_region
      %45 = dma.done [#allocation8], 256
    $region25: #{tpu_custom_call.1} parent=1 // pred_fallthru
      _
    %p47 = scmp.eq.s32.totalorder 0, 0
    // Predicated region
    $region26: #{tpu_custom_call.1} parent=1 // pred_check
      %p48 = pneg %p47
    $region27: #{tpu_custom_call.1} parent=1 // pred_check_branch
      %50 = sbr.rel (%p48) target = $region29
    $region28: #{tpu_custom_call.1} parent=1 // pred_region
      %vm51 = vcmask 7168
      %52 = vst.msk [vmem:[#allocation2] sm:$0xff] %vm51, -inf
      %53 = vst.msk [vmem:[#allocation3] sm:$0xff] %vm51, 0.0
      %vm54 = vcmask 261120
      %55 = vst.msk [vmem:[#allocation9] sm:$0xff] %vm54, 0.0
    $region29: #{tpu_custom_call.1} parent=1 // pred_fallthru
      _
    %v56 = vld [vmem:[#allocation4] sm:$0xf]
    %v57 = vld [vmem:[#allocation4 + $0x4] sm:$0xf]
    %v58 = vld [vmem:[#allocation4 + $0x8] sm:$0xf]
    %v59 = vld [vmem:[#allocation4 + $0xc] sm:$0xf]
    %v60 = vld [vmem:[#allocation4 + $0x10] sm:$0xf]
    %v61 = vld [vmem:[#allocation4 + $0x14] sm:$0xf]
    %v62 = vld [vmem:[#allocation4 + $0x18] sm:$0xf]
    %v63 = vld [vmem:[#allocation4 + $0x1c] sm:$0xf]
    %v64 = vld [vmem:[#allocation7] sm:$0xf]
    %v65 = vld [vmem:[#allocation7 + $0x4] sm:$0xf]
    %v66 = vld [vmem:[#allocation7 + $0x8] sm:$0xf]
    %v67 = vld [vmem:[#allocation7 + $0xc] sm:$0xf]
    %v68 = vld [vmem:[%s2] sm:$0x1]
    %v70 = vlaneseq
    %v71 = vshrl.u32 %v70, 7
    %v72 = vsub.s32 0, %v71
    %v73 = vrot.slane %v68, %v72
    %v83 = vunpack.c.l.b16 %v56
    %v84 = vunpack.c.l.b16 %v57
    %v85 = vunpack.c.l.b16 %v58
    %v86 = vunpack.c.l.b16 %v59
    %v87 = vunpack.c.l.b16 %v60
    %v88 = vunpack.c.l.b16 %v61
    %v89 = vunpack.c.l.b16 %v62
    %v90 = vunpack.c.l.b16 %v63
    %v91 = vpack.c.b16 %v84, %v83
    %v92 = vpack.c.b16 %v86, %v85
    %v93 = vpack.c.b16 %v88, %v87
    %v94 = vpack.c.b16 %v90, %v89
    %v99 = vunpack.c.l.b16 %v64
    %v100 = vunpack.c.l.b16 %v65
    %v101 = vunpack.c.l.b16 %v66
    %v102 = vunpack.c.l.b16 %v67
    %v103 = vpack.c.b16 %v100, %v99
    %v104 = vpack.c.b16 %v102, %v101
    %vm107 = vcmask 261120
    %v109 = vsel %vm107, %v91, 0
    %v112 = vsel %vm107, %v92, 0
    %v115 = vsel %vm107, %v93, 0
    %v118 = vsel %vm107, %v94, 0
    %120 = vmatprep.subr.bf16.mxu0 0
    %121 = vmatpush1.bf16.msra.mxu0 0
    %122 = vmatprep.subr.bf16.mxu0 0
    %123 = vmatpush1.bf16.msra.mxu0 0
    %124 = vmatprep.subr.bf16.mxu0 0
    %125 = vmatpush1.bf16.msra.mxu0 0
    %126 = vmatprep.subr.bf16.mxu0 0
    %127 = vmatpush1.bf16.msra.mxu0 0
    %128 = vmatprep.subr.bf16.mxu0 0
    %129 = vmatpush1.bf16.msra.mxu0 0
    %130 = vmatprep.subr.bf16.mxu0 0
    %131 = vmatpush1.bf16.msra.mxu0 0
    %132 = vmatprep.subr.bf16.mxu0 0
    %133 = vmatpush1.bf16.msra.mxu0 %v104
    %134 = vmatprep.subr.bf16.mxu0 0
    %135 = vmatpush1.bf16.msra.mxu0 %v103
    %136 = vmatprep.subr.bf16.mxu0 0
    %137 = vmatpush2.bf16.msra.mxu0 0
    %138 = vmatprep.subr.bf16.mxu0 0
    %139 = vmatpush2.bf16.msra.mxu0 0
    %140 = vmatprep.subr.bf16.mxu0 0
    %141 = vmatpush2.bf16.msra.mxu0 0
    %142 = vmatprep.subr.bf16.mxu0 0
    %143 = vmatpush2.bf16.msra.mxu0 0
    %144 = vmatprep.subr.bf16.mxu0 0
    %145 = vmatpush2.bf16.msra.mxu0 0
    %146 = vmatprep.subr.bf16.mxu0 0
    %147 = vmatpush2.bf16.msra.mxu0 0
    %148 = vmatprep.subr.bf16.mxu0 0
    %149 = vmatpush2.bf16.msra.mxu0 0
    %150 = vmatprep.subr.bf16.mxu0 0
    %151 = vmatpush2.bf16.msra.mxu0 0
    %152 = vmatprep.mubr.bf16.mxu0 0
    %153 = vmatmul.mubr.bf16.gmra.mxu0 %v109
    %v154 = vpop.f32.mrf.mxu0
    %v155 = vadd.f32 %v73, %v154
    %v156 = vpop.f32.mrf.mxu0
    %v157 = vpop.f32.mrf.mxu0
    %v158 = vadd.f32 %v73, %v157
    %v159 = vpop.f32.mrf.mxu0
    %160 = vmatprep.mubr.bf16.mxu0 0
    %161 = vmatmul.mubr.bf16.gmra.mxu0 %v112
    %v162 = vpop.f32.mrf.mxu0
    %v163 = vadd.f32 %v73, %v162
    %v164 = vpop.f32.mrf.mxu0
    %v165 = vpop.f32.mrf.mxu0
    %v166 = vadd.f32 %v73, %v165
    %v167 = vpop.f32.mrf.mxu0
    %168 = vmatprep.mubr.bf16.mxu0 0
    %169 = vmatmul.mubr.bf16.gmra.mxu0 %v115
    %v170 = vpop.f32.mrf.mxu0
    %v171 = vadd.f32 %v73, %v170
    %v172 = vpop.f32.mrf.mxu0
    %v173 = vpop.f32.mrf.mxu0
    %v174 = vadd.f32 %v73, %v173
    %v175 = vpop.f32.mrf.mxu0
    %176 = vmatprep.mubr.bf16.mxu0 0
    %177 = vmatmul.mubr.bf16.gmra.mxu0 %v118
    %v178 = vpop.f32.mrf.mxu0
    %v179 = vadd.f32 %v73, %v178
    %v180 = vpop.f32.mrf.mxu0
    %v181 = vpop.f32.mrf.mxu0
    %v182 = vadd.f32 %v73, %v181
    %v183 = vpop.f32.mrf.mxu0
    %184 = vdwg.mxu0
    %v185 = vpack.c.bf16 %v158, %v155
    %v186 = vpack.c.bf16 %v166, %v163
    %v187 = vpack.c.bf16 %v174, %v171
    %v188 = vpack.c.bf16 %v182, %v179
    %v189 = vtanh.bf16.pop %v185
    %v190 = vtanh.bf16.pop %v186
    %v191 = vtanh.bf16.pop %v187
    %v192 = vtanh.bf16.pop %v188
    %v197 = vunpack.c.l.b16 %v189
    %v198 = vunpack.c.h.b16 %v189
    %v199 = vunpack.c.l.b16 %v190
    %v200 = vunpack.c.h.b16 %v190
    %v201 = vunpack.c.l.b16 %v191
    %v202 = vunpack.c.h.b16 %v191
    %v203 = vunpack.c.l.b16 %v192
    %v204 = vunpack.c.h.b16 %v192
    %v205 = vpack.c.b16 %v197, %v197
    %v206 = vpack.c.b16 %v198, %v198
    %v207 = vpack.c.b16 %v199, %v199
    %v208 = vpack.c.b16 %v200, %v200
    %v209 = vpack.c.b16 %v201, %v201
    %v210 = vpack.c.b16 %v202, %v202
    %v211 = vpack.c.b16 %v203, %v203
    %v212 = vpack.c.b16 %v204, %v204
    %v221 = vld [vmem:[%s3] sm:$0x1]
    %v222 = vunpack.c.l.bf16 %v205
    %v223 = vunpack.c.l.bf16 %v206
    %v224 = vunpack.c.l.bf16 %v207
    %v225 = vunpack.c.l.bf16 %v208
    %v226 = vunpack.c.l.bf16 %v209
    %v227 = vunpack.c.l.bf16 %v210
    %v228 = vunpack.c.l.bf16 %v211
    %v229 = vunpack.c.l.bf16 %v212
    %v231 = vlaneseq
    %v232 = vshrl.u32 %v231, 7
    %v233 = vsub.s32 0, %v232
    %v234 = vrot.slane %v221, %v233
    %v236 = vmul.f32 %v222, %v234
    %v237 = vmul.f32 %v223, %v234
    %v238 = vmul.f32 %v224, %v234
    %v239 = vmul.f32 %v225, %v234
    %v240 = vmul.f32 %v226, %v234
    %v241 = vmul.f32 %v227, %v234
    %v242 = vmul.f32 %v228, %v234
    %v243 = vmul.f32 %v229, %v234
    %v244 = vsel %vm107, %v236, 0.0
    %245 = vadd.xlane.f32.xlu0 %v244
    %v246 = vpop.xlane.xlu0 %245
    %v247 = vsel %vm107, %v237, 0.0
    %248 = vadd.xlane.f32.xlu0 %v247
    %v249 = vpop.xlane.xlu0 %248
    %v250 = vsel %vm107, %v238, 0.0
    %251 = vadd.xlane.f32.xlu0 %v250
    %v252 = vpop.xlane.xlu0 %251
    %v253 = vsel %vm107, %v239, 0.0
    %254 = vadd.xlane.f32.xlu0 %v253
    %v255 = vpop.xlane.xlu0 %254
    %v256 = vsel %vm107, %v240, 0.0
    %257 = vadd.xlane.f32.xlu0 %v256
    %v258 = vpop.xlane.xlu0 %257
    %v259 = vsel %vm107, %v241, 0.0
    %260 = vadd.xlane.f32.xlu0 %v259
    %v261 = vpop.xlane.xlu0 %260
    %v262 = vsel %vm107, %v242, 0.0
    %263 = vadd.xlane.f32.xlu0 %v262
    %v264 = vpop.xlane.xlu0 %263
    %v265 = vsel %vm107, %v243, 0.0
    %266 = vadd.xlane.f32.xlu0 %v265
    %v267 = vpop.xlane.xlu0 %266
    %v268 = vld [vmem:[#allocation2] sm:$0xff]
    %v277 = vlaneseq
    %v278 = vand.u32 %v277, 127
    %v279 = vlaneseq
    %v280 = vshrl.u32 %v279, 7
    %v281 = vsub.s32 %v278, %v280
    %v282 = vrot.slane %v246, %v281
    %v283 = vlaneseq
    %v284 = vshrl.u32 %v283, 7
    %v285 = vsub.s32 %v278, %v284
    %v286 = vrot.slane %v249, %v285
    %v287 = vlaneseq
    %v288 = vshrl.u32 %v287, 7
    %v289 = vsub.s32 %v278, %v288
    %v290 = vrot.slane %v252, %v289
    %v291 = vlaneseq
    %v292 = vshrl.u32 %v291, 7
    %v293 = vsub.s32 %v278, %v292
    %v294 = vrot.slane %v255, %v293
    %v295 = vlaneseq
    %v296 = vshrl.u32 %v295, 7
    %v297 = vsub.s32 %v278, %v296
    %v298 = vrot.slane %v258, %v297
    %v299 = vlaneseq
    %v300 = vshrl.u32 %v299, 7
    %v301 = vsub.s32 %v278, %v300
    %v302 = vrot.slane %v261, %v301
    %v303 = vlaneseq
    %v304 = vshrl.u32 %v303, 7
    %v305 = vsub.s32 %v278, %v304
    %v306 = vrot.slane %v264, %v305
    %v307 = vlaneseq
    %v308 = vshrl.u32 %v307, 7
    %v309 = vsub.s32 %v278, %v308
    %v310 = vrot.slane %v267, %v309
    %vm311 = vcmask 1041409
    %v312 = vsel %vm311, %v286, %v282
    %vm313 = vcmask 1042434
    %v314 = vsel %vm313, %v290, %v312
    %vm315 = vcmask 1043459
    %v316 = vsel %vm315, %v294, %v314
    %vm317 = vcmask 1044484
    %v318 = vsel %vm317, %v298, %v316
    %vm319 = vcmask 1045509
    %v320 = vsel %vm319, %v302, %v318
    %vm321 = vcmask 1046534
    %v322 = vsel %vm321, %v306, %v320
    %vm323 = vcmask 1047559
    %v324 = vsel %vm323, %v310, %v322
    %vm326 = vcmask 64512
    %v327 = vsel %vm326, %v324, -inf
    %328 = vmax.xlane.f32.xlu0 %v327
    %v329 = vpop.xlane.xlu0 %328
    %v330 = vmax.f32 %v268, %v329
    %v331 = vsub.f32 %v268, %v330
    %v332 = vmul.f32 %v331, 1.442695
    %v333 = vpow.pop %v332
    %335 = vset.pattern.permute.xlu0 0
    %336 = vperm.xlu0 %335, %v330
    %v337 = vpop.permute.xlu0 %336
    %v338 = vlaneseq
    %v339 = vshrl.u32 %v338, 7
    %v340 = vsub.s32 0, %v339
    %v341 = vrot.slane %v337, %v340
    %v342 = vlaneseq
    %v343 = vshrl.u32 %v342, 7
    %v344 = vsub.s32 1, %v343
    %v345 = vrot.slane %v337, %v344
    %v346 = vlaneseq
    %v347 = vshrl.u32 %v346, 7
    %v348 = vsub.s32 2, %v347
    %v349 = vrot.slane %v337, %v348
    %v350 = vlaneseq
    %v351 = vshrl.u32 %v350, 7
    %v352 = vsub.s32 3, %v351
    %v353 = vrot.slane %v337, %v352
    %v354 = vlaneseq
    %v355 = vshrl.u32 %v354, 7
    %v356 = vsub.s32 4, %v355
    %v357 = vrot.slane %v337, %v356
    %v358 = vlaneseq
    %v359 = vshrl.u32 %v358, 7
    %v360 = vsub.s32 5, %v359
    %v361 = vrot.slane %v337, %v360
    %v362 = vlaneseq
    %v363 = vshrl.u32 %v362, 7
    %v364 = vsub.s32 6, %v363
    %v365 = vrot.slane %v337, %v364
    %v366 = vlaneseq
    %v367 = vshrl.u32 %v366, 7
    %v368 = vsub.s32 7, %v367
    %v369 = vrot.slane %v337, %v368
    %v378 = vsub.f32 %v246, %v341
    %v379 = vsub.f32 %v249, %v345
    %v380 = vsub.f32 %v252, %v349
    %v381 = vsub.f32 %v255, %v353
    %v382 = vsub.f32 %v258, %v357
    %v383 = vsub.f32 %v261, %v361
    %v384 = vsub.f32 %v264, %v365
    %v385 = vsub.f32 %v267, %v369
    %v386 = vmul.f32 %v378, 1.442695
    %v387 = vpow.pop %v386
    %v388 = vmul.f32 %v379, 1.442695
    %v389 = vpow.pop %v388
    %v390 = vmul.f32 %v380, 1.442695
    %v391 = vpow.pop %v390
    %v392 = vmul.f32 %v381, 1.442695
    %v393 = vpow.pop %v392
    %v394 = vmul.f32 %v382, 1.442695
    %v395 = vpow.pop %v394
    %v396 = vmul.f32 %v383, 1.442695
    %v397 = vpow.pop %v396
    %v398 = vmul.f32 %v384, 1.442695
    %v399 = vpow.pop %v398
    %v400 = vmul.f32 %v385, 1.442695
    %v401 = vpow.pop %v400
    %v402 = vld [vmem:[#allocation3] sm:$0xff]
    %v403 = vmul.f32 %v333, %v402
    %412 = vset.pattern.permute.xlu0 0
    %413 = vperm.xlu0 %412, %v387
    %v414 = vpop.permute.xlu0 %413
    %415 = vset.pattern.permute.xlu0 0
    %416 = vperm.xlu0 %415, %v389
    %v417 = vpop.permute.xlu0 %416
    %418 = vset.pattern.permute.xlu0 0
    %419 = vperm.xlu0 %418, %v391
    %v420 = vpop.permute.xlu0 %419
    %421 = vset.pattern.permute.xlu0 0
    %422 = vperm.xlu0 %421, %v393
    %v423 = vpop.permute.xlu0 %422
    %424 = vset.pattern.permute.xlu0 0
    %425 = vperm.xlu0 %424, %v395
    %v426 = vpop.permute.xlu0 %425
    %427 = vset.pattern.permute.xlu0 0
    %428 = vperm.xlu0 %427, %v397
    %v429 = vpop.permute.xlu0 %428
    %430 = vset.pattern.permute.xlu0 0
    %431 = vperm.xlu0 %430, %v399
    %v432 = vpop.permute.xlu0 %431
    %433 = vset.pattern.permute.xlu0 0
    %434 = vperm.xlu0 %433, %v401
    %v435 = vpop.permute.xlu0 %434
    %v436 = vlaneseq
    %v437 = vshrl.u32 %v436, 7
    %v438 = vsub.s32 %v278, %v437
    %v439 = vrot.slane %v414, %v438
    %v440 = vlaneseq
    %v441 = vshrl.u32 %v440, 7
    %v442 = vsub.s32 %v278, %v441
    %v443 = vrot.slane %v417, %v442
    %v444 = vlaneseq
    %v445 = vshrl.u32 %v444, 7
    %v446 = vsub.s32 %v278, %v445
    %v447 = vrot.slane %v420, %v446
    %v448 = vlaneseq
    %v449 = vshrl.u32 %v448, 7
    %v450 = vsub.s32 %v278, %v449
    %v451 = vrot.slane %v423, %v450
    %v452 = vlaneseq
    %v453 = vshrl.u32 %v452, 7
    %v454 = vsub.s32 %v278, %v453
    %v455 = vrot.slane %v426, %v454
    %v456 = vlaneseq
    %v457 = vshrl.u32 %v456, 7
    %v458 = vsub.s32 %v278, %v457
    %v459 = vrot.slane %v429, %v458
    %v460 = vlaneseq
    %v461 = vshrl.u32 %v460, 7
    %v462 = vsub.s32 %v278, %v461
    %v463 = vrot.slane %v432, %v462
    %v464 = vlaneseq
    %v465 = vshrl.u32 %v464, 7
    %v466 = vsub.s32 %v278, %v465
    %v467 = vrot.slane %v435, %v466
    %v468 = vsel %vm311, %v443, %v439
    %v469 = vsel %vm313, %v447, %v468
    %v470 = vsel %vm315, %v451, %v469
    %v471 = vsel %vm317, %v455, %v470
    %v472 = vsel %vm319, %v459, %v471
    %v473 = vsel %vm321, %v463, %v472
    %v474 = vsel %vm323, %v467, %v473
    %v476 = vsel %vm326, %v474, 0.0
    %477 = vadd.xlane.f32.xlu0 %v476
    %v478 = vpop.xlane.xlu0 %477
    %v479 = vadd.f32 %v403, %v478
    %vm480 = vcmask 7168
    %481 = vst.msk [vmem:[#allocation3] sm:$0xff] %vm480, %v479
    %v482 = vld [vmem:[#allocation9] sm:$0xff]
    %484 = vset.pattern.permute.xlu0 0
    %485 = vperm.xlu0 %484, %v333
    %v486 = vpop.permute.xlu0 %485
    %v488 = vmul.f32 %v486, %v482
    %v489 = vunpack.c.l.bf16 %v56
    %v490 = vunpack.c.l.bf16 %v57
    %v491 = vunpack.c.l.bf16 %v58
    %v492 = vunpack.c.l.bf16 %v59
    %v493 = vunpack.c.l.bf16 %v60
    %v494 = vunpack.c.l.bf16 %v61
    %v495 = vunpack.c.l.bf16 %v62
    %v496 = vunpack.c.l.bf16 %v63
    %v505 = vmul.f32 %v489, %v414
    %v506 = vmul.f32 %v490, %v417
    %v507 = vmul.f32 %v491, %v420
    %v508 = vmul.f32 %v492, %v423
    %v509 = vmul.f32 %v493, %v426
    %v510 = vmul.f32 %v494, %v429
    %v511 = vmul.f32 %v495, %v432
    %v512 = vmul.f32 %v496, %v435
    %v513 = vsel %vm107, %v505, 0.0
    %v514 = vrot.slane %v513, 4
    %v515 = vadd.f32 %v513, %v514
    %v516 = vrot.slane %v515, 2
    %v517 = vadd.f32 %v515, %v516
    %v518 = vrot.slane %v517, 1
    %v519 = vadd.f32 %v517, %v518
    %v520 = vsel %vm107, %v506, 0.0
    %v521 = vrot.slane %v520, 4
    %v522 = vadd.f32 %v520, %v521
    %v523 = vrot.slane %v522, 2
    %v524 = vadd.f32 %v522, %v523
    %v525 = vrot.slane %v524, 1
    %v526 = vadd.f32 %v524, %v525
    %v527 = vsel %vm107, %v507, 0.0
    %v528 = vrot.slane %v527, 4
    %v529 = vadd.f32 %v527, %v528
    %v530 = vrot.slane %v529, 2
    %v531 = vadd.f32 %v529, %v530
    %v532 = vrot.slane %v531, 1
    %v533 = vadd.f32 %v531, %v532
    %v534 = vsel %vm107, %v508, 0.0
    %v535 = vrot.slane %v534, 4
    %v536 = vadd.f32 %v534, %v535
    %v537 = vrot.slane %v536, 2
    %v538 = vadd.f32 %v536, %v537
    %v539 = vrot.slane %v538, 1
    %v540 = vadd.f32 %v538, %v539
    %v541 = vsel %vm107, %v509, 0.0
    %v542 = vrot.slane %v541, 4
    %v543 = vadd.f32 %v541, %v542
    %v544 = vrot.slane %v543, 2
    %v545 = vadd.f32 %v543, %v544
    %v546 = vrot.slane %v545, 1
    %v547 = vadd.f32 %v545, %v546
    %v548 = vsel %vm107, %v510, 0.0
    %v549 = vrot.slane %v548, 4
    %v550 = vadd.f32 %v548, %v549
    %v551 = vrot.slane %v550, 2
    %v552 = vadd.f32 %v550, %v551
    %v553 = vrot.slane %v552, 1
    %v554 = vadd.f32 %v552, %v553
    %v555 = vsel %vm107, %v511, 0.0
    %v556 = vrot.slane %v555, 4
    %v557 = vadd.f32 %v555, %v556
    %v558 = vrot.slane %v557, 2
    %v559 = vadd.f32 %v557, %v558
    %v560 = vrot.slane %v559, 1
    %v561 = vadd.f32 %v559, %v560
    %v562 = vsel %vm107, %v512, 0.0
    %v563 = vrot.slane %v562, 4
    %v564 = vadd.f32 %v562, %v563
    %v565 = vrot.slane %v564, 2
    %v566 = vadd.f32 %v564, %v565
    %v567 = vrot.slane %v566, 1
    %v568 = vadd.f32 %v566, %v567
    %v577 = vsel %vm311, %v526, %v519
    %v578 = vsel %vm313, %v533, %v577
    %v579 = vsel %vm315, %v540, %v578
    %v580 = vsel %vm317, %v547, %v579
    %v581 = vsel %vm319, %v554, %v580
    %v582 = vsel %vm321, %v561, %v581
    %v583 = vsel %vm323, %v568, %v582
    %v585 = vadd.f32 %v488, %v583
    %586 = vst.msk [vmem:[#allocation9] sm:$0xff] %vm107, %v585
    %587 = vst.msk [vmem:[#allocation2] sm:$0xff] %vm480, %v330
    // Predicated region
    $region30: #{tpu_custom_call.1} parent=1 // pred_check
      %p588 = pneg %p47
    $region31: #{tpu_custom_call.1} parent=1 // pred_check_branch
      %590 = sbr.rel (%p588) target = $region33
    $region32: #{tpu_custom_call.1} parent=1 // pred_region
      %v591 = vld [vmem:[#allocation9] sm:$0xff]
      %v592 = vld [vmem:[#allocation3] sm:$0xff]
      %v593 = vrcp.pop %v592
      %595 = vset.pattern.permute.xlu0 0
      %596 = vperm.xlu0 %595, %v593
      %v597 = vpop.permute.xlu0 %596
      %v599 = vmul.f32 %v591, %v597
      %600 = vst.msk [vmem:[#allocation9] sm:$0xff] %vm107, %v599
    $region33: #{tpu_custom_call.1} parent=1 // pred_fallthru
      _
    // Predicated region
    $region34: #{tpu_custom_call.1} parent=1 // pred_check
      _
    $region35: #{tpu_custom_call.1} parent=1 // pred_check_branch
      %602 = sbr.rel (0) target = $region37
    $region36: #{tpu_custom_call.1} parent=1 // pred_region
      %s604 = ssub.s32 128, 128
      %605 = vsyncadd [#allocation6], %s604
      %s607 = sshll.u32 [#allocation9], 4
      %s608 = int_to_ptr.vmem [resolvable:$true] %s607
      %610 = dma.vmem_to_hbm [thread:$0]  %s608, 128, %s4, [#allocation6]
    $region37: #{tpu_custom_call.1} parent=1 // pred_fallthru
      _
    // Predicated region
    $region38: #{tpu_custom_call.1} parent=1 // pred_check
      _
    $region39: #{tpu_custom_call.1} parent=1 // pred_check_branch
      %612 = sbr.rel (0) target = $region41
    $region40: #{tpu_custom_call.1} parent=1 // pred_region
      %613 = dma.done [#allocation6], 128
    $region41: #{tpu_custom_call.1} parent=1 // pred_fallthru
      _
    %614 = vsyncpa [#allocation5], 1
    %615 = vsyncpa [#allocation8], 1
    %616 = vsyncpa [#allocation6], 1

</llo_original>
